<compile_context>
chip_gen: v7x
topology: tpu7x:2x2x1
jax: 0.10.0
libtpu: 0.0.40
codegen_flags: <defaults>
</compile_context>

<pallas_src>
import functools

import numpy as np
import jax
import jax.numpy as jnp
from jax.experimental import pallas as pl
from jax.experimental.pallas import tpu as pltpu


# ----------------------------------------------------------------------------
# Fused Pallas kernel: whole CNN forward in VMEM
# ----------------------------------------------------------------------------
def _fused_cnn_kernel(xp_ref, m1_ref, b1_ref, m2_ref, b2_ref,
                      fw1_ref, fb1_ref, fw2_ref, fb2_ref,
                      out_ref,
                      xpad2_ref, zf_ref,
                      *, H, W, BPAD, C0, C1, C2):
    """conv3x3+ReLU -> conv3x3+ReLU -> maxpool2x2 -> FC+ReLU -> FC.

    Layouts (all f32):
      xp:   (H+2, BPAD, W*C0)  H-halo + batch-padded input, rows=(h,b), lanes=(w,c)
      m1:   (3, W*C0, W*C1)    banded conv1 weights (W-padding folded into band)
      m2:   (3, W*C1, W*C2)    banded conv2 weights, columns permuted to (w%2, w//2, c)
      b1/b2:(1, W*C)           lane-tiled conv biases
      fw1:  (Ho*W*C2, HID)     FC1 weights matching zf lane order (zeros on dup lanes)
      fw2:  (HID, 128)         FC2 weights lane-padded to 128 classes
      out:  (BPAD, 128)
    """
    HB = H * BPAD
    WC0, WC1, WC2 = W * C0, W * C1, W * C2
    Ho = H // 2

    # ---- conv1: 3 banded GEMMs (one per kernel row), K=W*C0, N=W*C1 --------
    acc = jnp.dot(xp_ref[0:H, :, :].reshape(HB, WC0), m1_ref[0],
                  preferred_element_type=jnp.float32)
    for kh in (1, 2):
        acc += jnp.dot(xp_ref[kh:kh + H, :, :].reshape(HB, WC0), m1_ref[kh],
                       preferred_element_type=jnp.float32)
    h1 = jnp.maximum(acc + b1_ref[...], 0.0)                  # (H*BPAD, W*C1)

    # ---- conv2 input: halo-only zeroing + tile-aligned interior store ------
    zrow = jnp.zeros((1, BPAD, WC1), jnp.float32)
    xpad2_ref[0:1, :, :] = zrow
    xpad2_ref[H + 1:H + 2, :, :] = zrow
    xpad2_ref[1:H + 1, :, :] = h1.reshape(H, BPAD, WC1)

    # ---- conv2: 3 banded GEMMs, K=W*C1, N=W*C2 ------------------------------
    acc = jnp.dot(xpad2_ref[0:H, :, :].reshape(HB, WC1), m2_ref[0],
                  preferred_element_type=jnp.float32)
    for kh in (1, 2):
        acc += jnp.dot(xpad2_ref[kh:kh + H, :, :].reshape(HB, WC1), m2_ref[kh],
                       preferred_element_type=jnp.float32)
    h2 = jnp.maximum(acc + b2_ref[...], 0.0)                  # (H*BPAD, W*C2)

    # ---- fused 2x2 max-pool + flatten ---------------------------------------
    # Rows are (h, b): the two H-pool partners are adjacent 8-row tile blocks.
    # Conv2 output lanes were permuted (host-side) to (w%2, w//2, c), so the
    # two W-pool partners sit exactly WC2//2 = 64 lanes apart: a half-width
    # roll pairs them regardless of roll direction; lanes [0, 64) hold the
    # pooled features (j, c), the upper half holds duplicates (zero-weighted
    # in fw1).
    for i in range(Ho):
        top = h2[(2 * i) * BPAD:(2 * i + 1) * BPAD, :]        # h = 2i
        bot = h2[(2 * i + 1) * BPAD:(2 * i + 2) * BPAD, :]    # h = 2i + 1
        hm = jnp.maximum(top, bot)                            # (BPAD, WC2)
        wm = jnp.maximum(hm, pltpu.roll(hm, shift=WC2 // 2, axis=1))
        zf_ref[:, i * WC2:(i + 1) * WC2] = wm                 # dense 128-lane store

    # ---- fc1 (single GEMM, K=Ho*W*C2) + ReLU, fc2 (lane-padded classes) -----
    z1 = jnp.maximum(
        jnp.dot(zf_ref[...], fw1_ref[...],
                preferred_element_type=jnp.float32) + fb1_ref[...], 0.0)
    out_ref[...] = (jnp.dot(z1, fw2_ref[...],
                            preferred_element_type=jnp.float32)
                    + fb2_ref[...]).astype(out_ref.dtype)


def _vmem_full(shape):
    """Resident full-array BlockSpec for the single-step grid."""
    n = len(shape)
    return pl.BlockSpec(shape, lambda i, _n=n: (0,) * _n)


# ----------------------------------------------------------------------------
# Host-side one-time weight layout prep (numpy; runs outside jit)
# ----------------------------------------------------------------------------
def _make_band_matrices(w_oihw, W, col_index_fn):
    """(Cout,Cin,3,3) conv weight -> (3, W*Cin, W*Cout) block-banded matrices.

    m[kh][wi*Cin + cin, col(wo, cout)] = w[cout, cin, kh, wi - wo + 1]
    (zero outside the band; the implicit W-direction zero-padding of the conv
    is realized by simply omitting out-of-range taps from the band).
    """
    w = np.asarray(w_oihw, np.float32)
    Cout, Cin, KH, KW = w.shape
    m = np.zeros((KH, W * Cin, W * Cout), np.float32)
    for kh in range(KH):
        for wo in range(W):
            for kw in range(KW):
                wi = wo + kw - 1
                if 0 <= wi < W:
                    for cout in range(Cout):
                        m[kh, wi * Cin:(wi + 1) * Cin,
                          col_index_fn(wo, cout)] = w[cout, :, kh, kw]
    return m


def prepare_kernel_params(params, in_size, out_classes, npad=128):
    C0, H, W = in_size
    w1 = np.asarray(params["conv_w"][0], np.float32)
    w2 = np.asarray(params["conv_w"][1], np.float32)
    b1 = np.asarray(params["conv_b"][0], np.float32)
    b2 = np.asarray(params["conv_b"][1], np.float32)
    fw1 = np.asarray(params["fc_w"][0], np.float32)
    fw2 = np.asarray(params["fc_w"][1], np.float32)
    fb1 = np.asarray(params["fc_b"][0], np.float32)
    fb2 = np.asarray(params["fc_b"][1], np.float32)

    C1, C2 = w1.shape[0], w2.shape[0]
    HID = fw1.shape[1]
    Ho, Wo = H // 2, W // 2

    # conv1: standard output lane order (w, c).
    m1 = _make_band_matrices(w1, W, lambda wo, co: wo * C1 + co)
    # conv2: output lanes permuted to (w%2, w//2, c) so the 2x2-pool W-partners
    # are exactly W*C2/2 lanes apart (half-width roll in-kernel).
    m2 = _make_band_matrices(
        w2, W, lambda wo, co: (wo % 2) * Wo * C2 + (wo // 2) * C2 + co)

    b1t = np.tile(b1, W).reshape(1, W * C1)
    b2t = np.tile(b2, W).reshape(1, W * C2)

    # FC1: PyTorch flatten order is (c, i, j); kernel's zf lane order per
    # i-block of W*C2 lanes is j*C2 + c in the lower half, duplicates (zeroed
    # here) in the upper half.
    t = fw1.reshape(C2, Ho, Wo, HID).transpose(1, 2, 0, 3)    # (Ho, Wo, C2, HID)
    fw1big = np.zeros((Ho, W * C2, HID), np.float32)
    fw1big[:, :Wo * C2, :] = t.reshape(Ho, Wo * C2, HID)
    fw1big = fw1big.reshape(Ho * W * C2, HID)

    fw2p = np.zeros((HID, npad), np.float32)
    fw2p[:, :out_classes] = fw2
    fb2p = np.zeros((1, npad), np.float32)
    fb2p[0, :out_classes] = fb2

    kp = dict(m1=jnp.asarray(m1), b1=jnp.asarray(b1t),
              m2=jnp.asarray(m2), b2=jnp.asarray(b2t),
              fw1=jnp.asarray(fw1big), fb1=jnp.asarray(fb1.reshape(1, HID)),
              fw2=jnp.asarray(fw2p), fb2=jnp.asarray(fb2p))
    dims = dict(C0=C0, C1=C1, C2=C2, H=H, W=W, HID=HID,
                NCLS=out_classes, NPAD=npad)
    return kp, dims


# ----------------------------------------------------------------------------
# Wrapper: input layout prep + one pallas_call
# ----------------------------------------------------------------------------
def cnn_forward(x_nchw, kp, dims):
    """Fused Pallas forward.  x_nchw: (B, C, H, W) f32 -> (B, out_classes)."""
    B, C0, H, W = x_nchw.shape
    C1, C2 = dims["C1"], dims["C2"]
    NCLS, NPAD = dims["NCLS"], dims["NPAD"]
    assert (C0, H, W) == (dims["C0"], dims["H"], dims["W"])
    assert H % 2 == 0 and W % 2 == 0
    BPAD = 8                        # pad batch to one sublane tile
    assert B <= BPAD

    # Input -> (h, b) x (w*c) lane-dense slab, H-halo and batch zero-padded.
    xt = jnp.transpose(x_nchw, (2, 0, 3, 1)).reshape(H, B, W * C0)
    xp = jnp.pad(xt, ((1, 1), (0, BPAD - B), (0, 0)))

    kernel = functools.partial(
        _fused_cnn_kernel, H=H, W=W, BPAD=BPAD, C0=C0, C1=C1, C2=C2)

    in_arrays = (xp, kp["m1"], kp["b1"], kp["m2"], kp["b2"],
                 kp["fw1"], kp["fb1"], kp["fw2"], kp["fb2"])

    out = pl.pallas_call(
        kernel,
        out_shape=jax.ShapeDtypeStruct((BPAD, NPAD), jnp.float32),
        grid=(1,),
        in_specs=[_vmem_full(a.shape) for a in in_arrays],
        out_specs=_vmem_full((BPAD, NPAD)),
        scratch_shapes=[
            pltpu.VMEM((H + 2, BPAD, W * C1), jnp.float32),   # H-padded conv2 in
            pltpu.VMEM((BPAD, (H // 2) * W * C2), jnp.float32),  # pooled+flattened
        ],
        compiler_params=pltpu.CompilerParams(
            dimension_semantics=("arbitrary",)),
    )(*in_arrays)

    return out[:B, :NCLS]


# ----------------------------------------------------------------------------
# Parameter init (fc weights stored (in, out))
# ----------------------------------------------------------------------------
def init_params(key, in_size, channels, hidden_dims, out_classes, pool_every):
    C, H, W = in_size
    params = {"conv_w": [], "conv_b": [], "fc_w": [], "fc_b": []}
    keys = jax.random.split(key, 2 * (len(channels) + len(hidden_dims) + 1))
    ki = iter(keys)
    cin = C
    for cout in channels:
        params["conv_w"].append(
            0.1 * jax.random.normal(next(ki), (cout, cin, 3, 3), jnp.float32))
        params["conv_b"].append(
            0.1 * jax.random.normal(next(ki), (cout,), jnp.float32))
        cin = cout
    n_pools = len(channels) // pool_every if pool_every > 0 else 0
    Hf, Wf = H // (2 ** n_pools), W // (2 ** n_pools)
    in_feat = cin * Hf * Wf
    for d in list(hidden_dims) + [out_classes]:
        params["fc_w"].append(
            0.1 * jax.random.normal(next(ki), (in_feat, d), jnp.float32))
        params["fc_b"].append(
            0.1 * jax.random.normal(next(ki), (d,), jnp.float32))
        in_feat = d
    return params


# ----------------------------------------------------------------------------
# Pure-JAX reference (correctness check only)
# ----------------------------------------------------------------------------
def reference_forward(x_nchw, params, pool_every=2):
    x = x_nchw
    for i, (w, b) in enumerate(zip(params["conv_w"], params["conv_b"])):
        x = jax.lax.conv_general_dilated(
            x, w, window_strides=(1, 1), padding=((1, 1), (1, 1)),
            dimension_numbers=("NCHW", "OIHW", "NCHW"))
        x = jnp.maximum(x + b[None, :, None, None], 0.0)
        if pool_every > 0 and (i + 1) % pool_every == 0:
            B, C, H, W = x.shape
            x = x.reshape(B, C, H // 2, 2, W // 2, 2).max(axis=(3, 5))
    z = x.reshape(x.shape[0], -1)
    for j, (w, b) in enumerate(zip(params["fc_w"], params["fc_b"])):
        z = z @ w + b
        if j < len(params["fc_w"]) - 1:
            z = jnp.maximum(z, 0.0)
    return z


if __name__ == "__main__":
    in_size = (4, 16, 16)        # (C, H, W)
    channels = [8, 8]
    pool_every = 2
    hidden_dims = [32]
    out_classes = 10
    batch = 2

    params = init_params(jax.random.PRNGKey(42), in_size, channels,
                         hidden_dims, out_classes, pool_every)
    x = jax.random.normal(jax.random.PRNGKey(0),
                          (batch, *in_size), jnp.float32)

    kp, dims = prepare_kernel_params(params, in_size, out_classes)
    fwd = jax.jit(functools.partial(cnn_forward, dims=dims))

    out = jax.block_until_ready(fwd(x, kp))
    ref = jax.block_until_ready(reference_forward(x, params, pool_every))

    assert out.shape == (batch, out_classes)
    np.testing.assert_allclose(np.asarray(out), np.asarray(ref),
                               rtol=1e-3, atol=1e-3)
    print("KERNEL_OK")
</pallas_src>

<mosaic_0001>
module attributes {stable_mosaic.version = 11 : i64} {
  func.func @_fused_cnn_kernel(%arg0: i32, %arg1: memref<18x8x64xf32, #tpu.memory_space<vmem>>, %arg2: memref<3x64x128xf32, #tpu.memory_space<vmem>>, %arg3: memref<1x128xf32, #tpu.memory_space<vmem>>, %arg4: memref<3x128x128xf32, #tpu.memory_space<vmem>>, %arg5: memref<1x128xf32, #tpu.memory_space<vmem>>, %arg6: memref<1024x32xf32, #tpu.memory_space<vmem>>, %arg7: memref<1x32xf32, #tpu.memory_space<vmem>>, %arg8: memref<32x128xf32, #tpu.memory_space<vmem>>, %arg9: memref<1x128xf32, #tpu.memory_space<vmem>>, %arg10: memref<8x128xf32, #tpu.memory_space<vmem>>, %arg11: memref<18x8x128xf32, #tpu.memory_space<vmem>>, %arg12: memref<8x1024xf32, #tpu.memory_space<vmem>>) attributes {dimension_semantics = [#tpu.dimension_semantics<arbitrary>], iteration_bounds = array<i64: 1>, scalar_prefetch = 0 : i64, scratch_operands = 2 : i64, tpu.core_type = #tpu.core_type<tc>, window_params = [{pipeline_mode = #tpu.pipeline_mode<synchronous>, transform_indices = @transform_0, window_bounds = array<i64: 18, 8, 64>}, {pipeline_mode = #tpu.pipeline_mode<synchronous>, transform_indices = @transform_1, window_bounds = array<i64: 3, 64, 128>}, {pipeline_mode = #tpu.pipeline_mode<synchronous>, transform_indices = @transform_2, window_bounds = array<i64: 1, 128>}, {pipeline_mode = #tpu.pipeline_mode<synchronous>, transform_indices = @transform_3, window_bounds = array<i64: 3, 128, 128>}, {pipeline_mode = #tpu.pipeline_mode<synchronous>, transform_indices = @transform_4, window_bounds = array<i64: 1, 128>}, {pipeline_mode = #tpu.pipeline_mode<synchronous>, transform_indices = @transform_5, window_bounds = array<i64: 1024, 32>}, {pipeline_mode = #tpu.pipeline_mode<synchronous>, transform_indices = @transform_6, window_bounds = array<i64: 1, 32>}, {pipeline_mode = #tpu.pipeline_mode<synchronous>, transform_indices = @transform_7, window_bounds = array<i64: 32, 128>}, {pipeline_mode = #tpu.pipeline_mode<synchronous>, transform_indices = @transform_8, window_bounds = array<i64: 1, 128>}, {pipeline_mode = #tpu.pipeline_mode<synchronous>, transform_indices = @transform_9, window_bounds = array<i64: 8, 128>}]} {
    %c0 = arith.constant 0 : index
    %c0_0 = arith.constant 0 : index
    %c0_1 = arith.constant 0 : index
    %0 = vector.load %arg1[%c0, %c0_0, %c0_1] : memref<18x8x64xf32, #tpu.memory_space<vmem>>, vector<16x8x64xf32>
    %1 = vector.shape_cast %0 : vector<16x8x64xf32> to vector<128x64xf32>
    %c0_2 = arith.constant 0 : index
    %c0_3 = arith.constant 0 : index
    %c0_4 = arith.constant 0 : index
    %2 = vector.load %arg2[%c0_2, %c0_3, %c0_4] : memref<3x64x128xf32, #tpu.memory_space<vmem>>, vector<1x64x128xf32>
    %3 = vector.shape_cast %2 : vector<1x64x128xf32> to vector<64x128xf32>
    %cst = arith.constant dense<0.000000e+00> : vector<128x128xf32>
    %4 = tpu.matmul %1, %3, %cst {dimension_numbers = #tpu.dot_dimension_numbers<[1], [0], [0], [1], [0, 0, 1, 1], [], []>} : vector<128x64xf32>, vector<64x128xf32>, vector<128x128xf32> -> vector<128x128xf32>
    %c1 = arith.constant 1 : index
    %c0_5 = arith.constant 0 : index
    %c0_6 = arith.constant 0 : index
    %5 = vector.load %arg1[%c1, %c0_5, %c0_6] : memref<18x8x64xf32, #tpu.memory_space<vmem>>, vector<16x8x64xf32>
    %6 = vector.shape_cast %5 : vector<16x8x64xf32> to vector<128x64xf32>
    %c1_7 = arith.constant 1 : index
    %c0_8 = arith.constant 0 : index
    %c0_9 = arith.constant 0 : index
    %7 = vector.load %arg2[%c1_7, %c0_8, %c0_9] : memref<3x64x128xf32, #tpu.memory_space<vmem>>, vector<1x64x128xf32>
    %8 = vector.shape_cast %7 : vector<1x64x128xf32> to vector<64x128xf32>
    %cst_10 = arith.constant dense<0.000000e+00> : vector<128x128xf32>
    %9 = tpu.matmul %6, %8, %cst_10 {dimension_numbers = #tpu.dot_dimension_numbers<[1], [0], [0], [1], [0, 0, 1, 1], [], []>} : vector<128x64xf32>, vector<64x128xf32>, vector<128x128xf32> -> vector<128x128xf32>
    %10 = arith.addf %4, %9 : vector<128x128xf32>
    %c2 = arith.constant 2 : index
    %c0_11 = arith.constant 0 : index
    %c0_12 = arith.constant 0 : index
    %11 = vector.load %arg1[%c2, %c0_11, %c0_12] : memref<18x8x64xf32, #tpu.memory_space<vmem>>, vector<16x8x64xf32>
    %12 = vector.shape_cast %11 : vector<16x8x64xf32> to vector<128x64xf32>
    %c2_13 = arith.constant 2 : index
    %c0_14 = arith.constant 0 : index
    %c0_15 = arith.constant 0 : index
    %13 = vector.load %arg2[%c2_13, %c0_14, %c0_15] : memref<3x64x128xf32, #tpu.memory_space<vmem>>, vector<1x64x128xf32>
    %14 = vector.shape_cast %13 : vector<1x64x128xf32> to vector<64x128xf32>
    %cst_16 = arith.constant dense<0.000000e+00> : vector<128x128xf32>
    %15 = tpu.matmul %12, %14, %cst_16 {dimension_numbers = #tpu.dot_dimension_numbers<[1], [0], [0], [1], [0, 0, 1, 1], [], []>} : vector<128x64xf32>, vector<64x128xf32>, vector<128x128xf32> -> vector<128x128xf32>
    %16 = arith.addf %10, %15 : vector<128x128xf32>
    %c0_17 = arith.constant 0 : index
    %c0_18 = arith.constant 0 : index
    %17 = vector.load %arg3[%c0_17, %c0_18] : memref<1x128xf32, #tpu.memory_space<vmem>>, vector<1x128xf32>
    %18 = vector.broadcast %17 : vector<1x128xf32> to vector<128x128xf32>
    %19 = arith.addf %16, %18 : vector<128x128xf32>
    %cst_19 = arith.constant 0.000000e+00 : f32
    %20 = vector.broadcast %cst_19 : f32 to vector<128x128xf32>
    %21 = arith.maximumf %19, %20 : vector<128x128xf32>
    %cst_20 = arith.constant 0.000000e+00 : f32
    %22 = vector.broadcast %cst_20 : f32 to vector<1x8x128xf32>
    %c0_21 = arith.constant 0 : index
    %c0_22 = arith.constant 0 : index
    %c0_23 = arith.constant 0 : index
    %23 = vector.load %arg11[%c0_21, %c0_22, %c0_23] : memref<18x8x128xf32, #tpu.memory_space<vmem>>, vector<1x8x128xf32>
    tpu.vector_store %arg11[%c0_21, %c0_22, %c0_23], %22 {strides = array<i32>} : memref<18x8x128xf32, #tpu.memory_space<vmem>>, vector<1x8x128xf32>,
    %c17 = arith.constant 17 : index
    %c0_24 = arith.constant 0 : index
    %c0_25 = arith.constant 0 : index
    %24 = vector.load %arg11[%c17, %c0_24, %c0_25] : memref<18x8x128xf32, #tpu.memory_space<vmem>>, vector<1x8x128xf32>
    tpu.vector_store %arg11[%c17, %c0_24, %c0_25], %22 {strides = array<i32>} : memref<18x8x128xf32, #tpu.memory_space<vmem>>, vector<1x8x128xf32>,
    %25 = vector.shape_cast %21 : vector<128x128xf32> to vector<16x8x128xf32>
    %c1_26 = arith.constant 1 : index
    %c0_27 = arith.constant 0 : index
    %c0_28 = arith.constant 0 : index
    %26 = vector.load %arg11[%c1_26, %c0_27, %c0_28] : memref<18x8x128xf32, #tpu.memory_space<vmem>>, vector<16x8x128xf32>
    tpu.vector_store %arg11[%c1_26, %c0_27, %c0_28], %25 {strides = array<i32>} : memref<18x8x128xf32, #tpu.memory_space<vmem>>, vector<16x8x128xf32>,
    %c0_29 = arith.constant 0 : index
    %c0_30 = arith.constant 0 : index
    %c0_31 = arith.constant 0 : index
    %27 = vector.load %arg11[%c0_29, %c0_30, %c0_31] : memref<18x8x128xf32, #tpu.memory_space<vmem>>, vector<16x8x128xf32>
    %28 = vector.shape_cast %27 : vector<16x8x128xf32> to vector<128x128xf32>
    %c0_32 = arith.constant 0 : index
    %c0_33 = arith.constant 0 : index
    %c0_34 = arith.constant 0 : index
    %29 = vector.load %arg4[%c0_32, %c0_33, %c0_34] : memref<3x128x128xf32, #tpu.memory_space<vmem>>, vector<1x128x128xf32>
    %30 = vector.shape_cast %29 : vector<1x128x128xf32> to vector<128x128xf32>
    %cst_35 = arith.constant dense<0.000000e+00> : vector<128x128xf32>
    %31 = tpu.matmul %28, %30, %cst_35 {dimension_numbers = #tpu.dot_dimension_numbers<[1], [0], [0], [1], [0, 0, 1, 1], [], []>} : vector<128x128xf32>, vector<128x128xf32>, vector<128x128xf32> -> vector<128x128xf32>
    %c1_36 = arith.constant 1 : index
    %c0_37 = arith.constant 0 : index
    %c0_38 = arith.constant 0 : index
    %32 = vector.load %arg11[%c1_36, %c0_37, %c0_38] : memref<18x8x128xf32, #tpu.memory_space<vmem>>, vector<16x8x128xf32>
    %33 = vector.shape_cast %32 : vector<16x8x128xf32> to vector<128x128xf32>
    %c1_39 = arith.constant 1 : index
    %c0_40 = arith.constant 0 : index
    %c0_41 = arith.constant 0 : index
    %34 = vector.load %arg4[%c1_39, %c0_40, %c0_41] : memref<3x128x128xf32, #tpu.memory_space<vmem>>, vector<1x128x128xf32>
    %35 = vector.shape_cast %34 : vector<1x128x128xf32> to vector<128x128xf32>
    %cst_42 = arith.constant dense<0.000000e+00> : vector<128x128xf32>
    %36 = tpu.matmul %33, %35, %cst_42 {dimension_numbers = #tpu.dot_dimension_numbers<[1], [0], [0], [1], [0, 0, 1, 1], [], []>} : vector<128x128xf32>, vector<128x128xf32>, vector<128x128xf32> -> vector<128x128xf32>
    %37 = arith.addf %31, %36 : vector<128x128xf32>
    %c2_43 = arith.constant 2 : index
    %c0_44 = arith.constant 0 : index
    %c0_45 = arith.constant 0 : index
    %38 = vector.load %arg11[%c2_43, %c0_44, %c0_45] : memref<18x8x128xf32, #tpu.memory_space<vmem>>, vector<16x8x128xf32>
    %39 = vector.shape_cast %38 : vector<16x8x128xf32> to vector<128x128xf32>
    %c2_46 = arith.constant 2 : index
    %c0_47 = arith.constant 0 : index
    %c0_48 = arith.constant 0 : index
    %40 = vector.load %arg4[%c2_46, %c0_47, %c0_48] : memref<3x128x128xf32, #tpu.memory_space<vmem>>, vector<1x128x128xf32>
    %41 = vector.shape_cast %40 : vector<1x128x128xf32> to vector<128x128xf32>
    %cst_49 = arith.constant dense<0.000000e+00> : vector<128x128xf32>
    %42 = tpu.matmul %39, %41, %cst_49 {dimension_numbers = #tpu.dot_dimension_numbers<[1], [0], [0], [1], [0, 0, 1, 1], [], []>} : vector<128x128xf32>, vector<128x128xf32>, vector<128x128xf32> -> vector<128x128xf32>
    %43 = arith.addf %37, %42 : vector<128x128xf32>
    %c0_50 = arith.constant 0 : index
    %c0_51 = arith.constant 0 : index
    %44 = vector.load %arg5[%c0_50, %c0_51] : memref<1x128xf32, #tpu.memory_space<vmem>>, vector<1x128xf32>
    %45 = vector.broadcast %44 : vector<1x128xf32> to vector<128x128xf32>
    %46 = arith.addf %43, %45 : vector<128x128xf32>
    %cst_52 = arith.constant 0.000000e+00 : f32
    %47 = vector.broadcast %cst_52 : f32 to vector<128x128xf32>
    %48 = arith.maximumf %46, %47 : vector<128x128xf32>
    %49 = vector.extract_strided_slice %48 {offsets = [0, 0], sizes = [8, 128], strides = [1, 1]} : vector<128x128xf32> to vector<8x128xf32>
    %50 = vector.extract_strided_slice %48 {offsets = [8, 0], sizes = [8, 128], strides = [1, 1]} : vector<128x128xf32> to vector<8x128xf32>
    %51 = arith.maximumf %49, %50 : vector<8x128xf32>
    %c64_i32 = arith.constant 64 : i32
    %52 = tpu.dynamic_rotate %51 by %c64_i32 dim 1 : vector<8x128xf32>, i32 -> vector<8x128xf32>
    %53 = arith.maximumf %51, %52 : vector<8x128xf32>
    %c0_53 = arith.constant 0 : index
    %c0_54 = arith.constant 0 : index
    %54 = vector.load %arg12[%c0_53, %c0_54] : memref<8x1024xf32, #tpu.memory_space<vmem>>, vector<8x128xf32>
    tpu.vector_store %arg12[%c0_53, %c0_54], %53 {strides = array<i32>} : memref<8x1024xf32, #tpu.memory_space<vmem>>, vector<8x128xf32>,
    %55 = vector.extract_strided_slice %48 {offsets = [16, 0], sizes = [8, 128], strides = [1, 1]} : vector<128x128xf32> to vector<8x128xf32>
    %56 = vector.extract_strided_slice %48 {offsets = [24, 0], sizes = [8, 128], strides = [1, 1]} : vector<128x128xf32> to vector<8x128xf32>
    %57 = arith.maximumf %55, %56 : vector<8x128xf32>
    %c64_i32_55 = arith.constant 64 : i32
    %58 = tpu.dynamic_rotate %57 by %c64_i32_55 dim 1 : vector<8x128xf32>, i32 -> vector<8x128xf32>
    %59 = arith.maximumf %57, %58 : vector<8x128xf32>
    %c0_56 = arith.constant 0 : index
    %c128 = arith.constant 128 : index
    %60 = vector.load %arg12[%c0_56, %c128] : memref<8x1024xf32, #tpu.memory_space<vmem>>, vector<8x128xf32>
    tpu.vector_store %arg12[%c0_56, %c128], %59 {strides = array<i32>} : memref<8x1024xf32, #tpu.memory_space<vmem>>, vector<8x128xf32>,
    %61 = vector.extract_strided_slice %48 {offsets = [32, 0], sizes = [8, 128], strides = [1, 1]} : vector<128x128xf32> to vector<8x128xf32>
    %62 = vector.extract_strided_slice %48 {offsets = [40, 0], sizes = [8, 128], strides = [1, 1]} : vector<128x128xf32> to vector<8x128xf32>
    %63 = arith.maximumf %61, %62 : vector<8x128xf32>
    %c64_i32_57 = arith.constant 64 : i32
    %64 = tpu.dynamic_rotate %63 by %c64_i32_57 dim 1 : vector<8x128xf32>, i32 -> vector<8x128xf32>
    %65 = arith.maximumf %63, %64 : vector<8x128xf32>
    %c0_58 = arith.constant 0 : index
    %c256 = arith.constant 256 : index
    %66 = vector.load %arg12[%c0_58, %c256] : memref<8x1024xf32, #tpu.memory_space<vmem>>, vector<8x128xf32>
    tpu.vector_store %arg12[%c0_58, %c256], %65 {strides = array<i32>} : memref<8x1024xf32, #tpu.memory_space<vmem>>, vector<8x128xf32>,
    %67 = vector.extract_strided_slice %48 {offsets = [48, 0], sizes = [8, 128], strides = [1, 1]} : vector<128x128xf32> to vector<8x128xf32>
    %68 = vector.extract_strided_slice %48 {offsets = [56, 0], sizes = [8, 128], strides = [1, 1]} : vector<128x128xf32> to vector<8x128xf32>
    %69 = arith.maximumf %67, %68 : vector<8x128xf32>
    %c64_i32_59 = arith.constant 64 : i32
    %70 = tpu.dynamic_rotate %69 by %c64_i32_59 dim 1 : vector<8x128xf32>, i32 -> vector<8x128xf32>
    %71 = arith.maximumf %69, %70 : vector<8x128xf32>
    %c0_60 = arith.constant 0 : index
    %c384 = arith.constant 384 : index
    %72 = vector.load %arg12[%c0_60, %c384] : memref<8x1024xf32, #tpu.memory_space<vmem>>, vector<8x128xf32>
    tpu.vector_store %arg12[%c0_60, %c384], %71 {strides = array<i32>} : memref<8x1024xf32, #tpu.memory_space<vmem>>, vector<8x128xf32>,
    %73 = vector.extract_strided_slice %48 {offsets = [64, 0], sizes = [8, 128], strides = [1, 1]} : vector<128x128xf32> to vector<8x128xf32>
    %74 = vector.extract_strided_slice %48 {offsets = [72, 0], sizes = [8, 128], strides = [1, 1]} : vector<128x128xf32> to vector<8x128xf32>
    %75 = arith.maximumf %73, %74 : vector<8x128xf32>
    %c64_i32_61 = arith.constant 64 : i32
    %76 = tpu.dynamic_rotate %75 by %c64_i32_61 dim 1 : vector<8x128xf32>, i32 -> vector<8x128xf32>
    %77 = arith.maximumf %75, %76 : vector<8x128xf32>
    %c0_62 = arith.constant 0 : index
    %c512 = arith.constant 512 : index
    %78 = vector.load %arg12[%c0_62, %c512] : memref<8x1024xf32, #tpu.memory_space<vmem>>, vector<8x128xf32>
    tpu.vector_store %arg12[%c0_62, %c512], %77 {strides = array<i32>} : memref<8x1024xf32, #tpu.memory_space<vmem>>, vector<8x128xf32>,
    %79 = vector.extract_strided_slice %48 {offsets = [80, 0], sizes = [8, 128], strides = [1, 1]} : vector<128x128xf32> to vector<8x128xf32>
    %80 = vector.extract_strided_slice %48 {offsets = [88, 0], sizes = [8, 128], strides = [1, 1]} : vector<128x128xf32> to vector<8x128xf32>
    %81 = arith.maximumf %79, %80 : vector<8x128xf32>
    %c64_i32_63 = arith.constant 64 : i32
    %82 = tpu.dynamic_rotate %81 by %c64_i32_63 dim 1 : vector<8x128xf32>, i32 -> vector<8x128xf32>
    %83 = arith.maximumf %81, %82 : vector<8x128xf32>
    %c0_64 = arith.constant 0 : index
    %c640 = arith.constant 640 : index
    %84 = vector.load %arg12[%c0_64, %c640] : memref<8x1024xf32, #tpu.memory_space<vmem>>, vector<8x128xf32>
    tpu.vector_store %arg12[%c0_64, %c640], %83 {strides = array<i32>} : memref<8x1024xf32, #tpu.memory_space<vmem>>, vector<8x128xf32>,
    %85 = vector.extract_strided_slice %48 {offsets = [96, 0], sizes = [8, 128], strides = [1, 1]} : vector<128x128xf32> to vector<8x128xf32>
    %86 = vector.extract_strided_slice %48 {offsets = [104, 0], sizes = [8, 128], strides = [1, 1]} : vector<128x128xf32> to vector<8x128xf32>
    %87 = arith.maximumf %85, %86 : vector<8x128xf32>
    %c64_i32_65 = arith.constant 64 : i32
    %88 = tpu.dynamic_rotate %87 by %c64_i32_65 dim 1 : vector<8x128xf32>, i32 -> vector<8x128xf32>
    %89 = arith.maximumf %87, %88 : vector<8x128xf32>
    %c0_66 = arith.constant 0 : index
    %c768 = arith.constant 768 : index
    %90 = vector.load %arg12[%c0_66, %c768] : memref<8x1024xf32, #tpu.memory_space<vmem>>, vector<8x128xf32>
    tpu.vector_store %arg12[%c0_66, %c768], %89 {strides = array<i32>} : memref<8x1024xf32, #tpu.memory_space<vmem>>, vector<8x128xf32>,
    %91 = vector.extract_strided_slice %48 {offsets = [112, 0], sizes = [8, 128], strides = [1, 1]} : vector<128x128xf32> to vector<8x128xf32>
    %92 = vector.extract_strided_slice %48 {offsets = [120, 0], sizes = [8, 128], strides = [1, 1]} : vector<128x128xf32> to vector<8x128xf32>
    %93 = arith.maximumf %91, %92 : vector<8x128xf32>
    %c64_i32_67 = arith.constant 64 : i32
    %94 = tpu.dynamic_rotate %93 by %c64_i32_67 dim 1 : vector<8x128xf32>, i32 -> vector<8x128xf32>
    %95 = arith.maximumf %93, %94 : vector<8x128xf32>
    %c0_68 = arith.constant 0 : index
    %c896 = arith.constant 896 : index
    %96 = vector.load %arg12[%c0_68, %c896] : memref<8x1024xf32, #tpu.memory_space<vmem>>, vector<8x128xf32>
    tpu.vector_store %arg12[%c0_68, %c896], %95 {strides = array<i32>} : memref<8x1024xf32, #tpu.memory_space<vmem>>, vector<8x128xf32>,
    %c0_69 = arith.constant 0 : index
    %c0_70 = arith.constant 0 : index
    %97 = vector.load %arg12[%c0_69, %c0_70] : memref<8x1024xf32, #tpu.memory_space<vmem>>, vector<8x1024xf32>
    %c0_71 = arith.constant 0 : index
    %c0_72 = arith.constant 0 : index
    %98 = vector.load %arg6[%c0_71, %c0_72] : memref<1024x32xf32, #tpu.memory_space<vmem>>, vector<1024x32xf32>
    %cst_73 = arith.constant dense<0.000000e+00> : vector<8x32xf32>
    %99 = tpu.matmul %97, %98, %cst_73 {dimension_numbers = #tpu.dot_dimension_numbers<[1], [0], [0], [1], [0, 0, 1, 1], [], []>} : vector<8x1024xf32>, vector<1024x32xf32>, vector<8x32xf32> -> vector<8x32xf32>
    %c0_74 = arith.constant 0 : index
    %c0_75 = arith.constant 0 : index
    %100 = vector.load %arg7[%c0_74, %c0_75] : memref<1x32xf32, #tpu.memory_space<vmem>>, vector<1x32xf32>
    %101 = vector.broadcast %100 : vector<1x32xf32> to vector<8x32xf32>
    %102 = arith.addf %99, %101 : vector<8x32xf32>
    %cst_76 = arith.constant 0.000000e+00 : f32
    %103 = vector.broadcast %cst_76 : f32 to vector<8x32xf32>
    %104 = arith.maximumf %102, %103 : vector<8x32xf32>
    %c0_77 = arith.constant 0 : index
    %c0_78 = arith.constant 0 : index
    %105 = vector.load %arg8[%c0_77, %c0_78] : memref<32x128xf32, #tpu.memory_space<vmem>>, vector<32x128xf32>
    %cst_79 = arith.constant dense<0.000000e+00> : vector<8x128xf32>
    %106 = tpu.matmul %104, %105, %cst_79 {dimension_numbers = #tpu.dot_dimension_numbers<[1], [0], [0], [1], [0, 0, 1, 1], [], []>} : vector<8x32xf32>, vector<32x128xf32>, vector<8x128xf32> -> vector<8x128xf32>
    %c0_80 = arith.constant 0 : index
    %c0_81 = arith.constant 0 : index
    %107 = vector.load %arg9[%c0_80, %c0_81] : memref<1x128xf32, #tpu.memory_space<vmem>>, vector<1x128xf32>
    %108 = vector.broadcast %107 : vector<1x128xf32> to vector<8x128xf32>
    %109 = arith.addf %106, %108 : vector<8x128xf32>
    %c0_82 = arith.constant 0 : index
    %c0_83 = arith.constant 0 : index
    %110 = vector.load %arg10[%c0_82, %c0_83] : memref<8x128xf32, #tpu.memory_space<vmem>>, vector<8x128xf32>
    tpu.vector_store %arg10[%c0_82, %c0_83], %109 {strides = array<i32>} : memref<8x128xf32, #tpu.memory_space<vmem>>, vector<8x128xf32>,
    return
  }
  func.func @transform_0(%arg0: i32) -> (i32, i32, i32) {
    %c0_i32 = arith.constant 0 : i32
    %c0_i32_0 = arith.constant 0 : i32
    %c0_i32_1 = arith.constant 0 : i32
    %c0_i32_2 = arith.constant 0 : i32
    return %c0_i32, %c0_i32_0, %c0_i32_1 : i32, i32, i32
  }
  func.func @transform_1(%arg0: i32) -> (i32, i32, i32) {
    %c0_i32 = arith.constant 0 : i32
    %c0_i32_0 = arith.constant 0 : i32
    %c0_i32_1 = arith.constant 0 : i32
    %c0_i32_2 = arith.constant 0 : i32
    return %c0_i32, %c0_i32_0, %c0_i32_1 : i32, i32, i32
  }
  func.func @transform_2(%arg0: i32) -> (i32, i32) {
    %c0_i32 = arith.constant 0 : i32
    %c0_i32_0 = arith.constant 0 : i32
    %c0_i32_1 = arith.constant 0 : i32
    return %c0_i32, %c0_i32_0 : i32, i32
  }
  func.func @transform_3(%arg0: i32) -> (i32, i32, i32) {
    %c0_i32 = arith.constant 0 : i32
    %c0_i32_0 = arith.constant 0 : i32
    %c0_i32_1 = arith.constant 0 : i32
    %c0_i32_2 = arith.constant 0 : i32
    return %c0_i32, %c0_i32_0, %c0_i32_1 : i32, i32, i32
  }
  func.func @transform_4(%arg0: i32) -> (i32, i32) {
    %c0_i32 = arith.constant 0 : i32
    %c0_i32_0 = arith.constant 0 : i32
    %c0_i32_1 = arith.constant 0 : i32
    return %c0_i32, %c0_i32_0 : i32, i32
  }
  func.func @transform_5(%arg0: i32) -> (i32, i32) {
    %c0_i32 = arith.constant 0 : i32
    %c0_i32_0 = arith.constant 0 : i32
    %c0_i32_1 = arith.constant 0 : i32
    return %c0_i32, %c0_i32_0 : i32, i32
  }
  func.func @transform_6(%arg0: i32) -> (i32, i32) {
    %c0_i32 = arith.constant 0 : i32
    %c0_i32_0 = arith.constant 0 : i32
    %c0_i32_1 = arith.constant 0 : i32
    return %c0_i32, %c0_i32_0 : i32, i32
  }
  func.func @transform_7(%arg0: i32) -> (i32, i32) {
    %c0_i32 = arith.constant 0 : i32
    %c0_i32_0 = arith.constant 0 : i32
    %c0_i32_1 = arith.constant 0 : i32
    return %c0_i32, %c0_i32_0 : i32, i32
  }
  func.func @transform_8(%arg0: i32) -> (i32, i32) {
    %c0_i32 = arith.constant 0 : i32
    %c0_i32_0 = arith.constant 0 : i32
    %c0_i32_1 = arith.constant 0 : i32
    return %c0_i32, %c0_i32_0 : i32, i32
  }
  func.func @transform_9(%arg0: i32) -> (i32, i32) {
    %c0_i32 = arith.constant 0 : i32
    %c0_i32_0 = arith.constant 0 : i32
    %c0_i32_1 = arith.constant 0 : i32
    return %c0_i32, %c0_i32_0 : i32, i32
  }
}

</mosaic_0001>

<llo_original>
// kernel: cnn_forward.1
$region0: #{cnn_forward.1}
  #allocation0 [shape = 'u32[]', space=smem, size = 0x4, offset = 0x4, fixed_abs, tag = 'smem constant byte address 0x4 - core index']
  #allocation1 [shape = 'u32[144,128]{1,0:T(1,128)}', space=vmem, size = 0x12000, scoped, tag = 'internal scratch']
  #allocation2 [shape = 'f32[18,8,128]{2,1,0:T(8,128)}', space=vmem, size = 0x12000, scoped, tag = 'scratch operand']
  #allocation3 [shape = 'f32[8,1024]{1,0:T(8,128)}', space=vmem, size = 0x8000, scoped, tag = 'scratch operand']
  %s0 = inlined_call_operand.vmem [shape: f32[18,8,64], index: 0, kind: input, shape index: {}]
  %s1 = inlined_call_operand.vmem [shape: f32[3,64,128], index: 1, kind: input, shape index: {}]
  %s2 = inlined_call_operand.vmem [shape: f32[1,128], index: 2, kind: input, shape index: {}]
  %s3 = inlined_call_operand.vmem [shape: f32[3,128,128], index: 3, kind: input, shape index: {}]
  %s4 = inlined_call_operand.vmem [shape: f32[1,128], index: 4, kind: input, shape index: {}]
  %s5 = inlined_call_operand.vmem [shape: f32[1024,32], index: 5, kind: input, shape index: {}]
  %s6 = inlined_call_operand.vmem [shape: f32[1,32], index: 6, kind: input, shape index: {}]
  %s7 = inlined_call_operand.vmem [shape: f32[32,128], index: 7, kind: input, shape index: {}]
  %s8 = inlined_call_operand.vmem [shape: f32[1,128], index: 8, kind: input, shape index: {}]
  %s9 = inlined_call_operand.vmem [shape: f32[8,128], index: 9, kind: output, shape index: {}]
  %s10 = sld [smem:[#allocation0]]
  $region46: #{cnn_forward.1} parent=0
    _
  %s12 = ssub.s32 1, %s10
  %s13 = scalar_select 0, %s12, %s10
  // Predicated region
  $region2: #{cnn_forward.1} parent=0 // pred_check
    _
  $region3: #{cnn_forward.1} parent=0 // pred_check_branch
    %15 = sbr.rel (0) target = $region5
  $region4: #{cnn_forward.1} parent=0 // pred_region
    _
  $region5: #{cnn_forward.1} parent=0 // pred_fallthru
    _
  // Predicated region
  $region6: #{cnn_forward.1} parent=0 // pred_check
    _
  $region7: #{cnn_forward.1} parent=0 // pred_check_branch
    %17 = sbr.rel (0) target = $region9
  $region8: #{cnn_forward.1} parent=0 // pred_region
    _
  $region9: #{cnn_forward.1} parent=0 // pred_fallthru
    _
  // Predicated region
  $region10: #{cnn_forward.1} parent=0 // pred_check
    _
  $region11: #{cnn_forward.1} parent=0 // pred_check_branch
    %19 = sbr.rel (0) target = $region13
  $region12: #{cnn_forward.1} parent=0 // pred_region
    _
  $region13: #{cnn_forward.1} parent=0 // pred_fallthru
    _
  // Predicated region
  $region14: #{cnn_forward.1} parent=0 // pred_check
    _
  $region15: #{cnn_forward.1} parent=0 // pred_check_branch
    %21 = sbr.rel (0) target = $region17
  $region16: #{cnn_forward.1} parent=0 // pred_region
    _
  $region17: #{cnn_forward.1} parent=0 // pred_fallthru
    _
  // Predicated region
  $region18: #{cnn_forward.1} parent=0 // pred_check
    _
  $region19: #{cnn_forward.1} parent=0 // pred_check_branch
    %23 = sbr.rel (0) target = $region21
  $region20: #{cnn_forward.1} parent=0 // pred_region
    _
  $region21: #{cnn_forward.1} parent=0 // pred_fallthru
    _
  // Predicated region
  $region22: #{cnn_forward.1} parent=0 // pred_check
    _
  $region23: #{cnn_forward.1} parent=0 // pred_check_branch
    %25 = sbr.rel (0) target = $region25
  $region24: #{cnn_forward.1} parent=0 // pred_region
    _
  $region25: #{cnn_forward.1} parent=0 // pred_fallthru
    _
  // Predicated region
  $region26: #{cnn_forward.1} parent=0 // pred_check
    _
  $region27: #{cnn_forward.1} parent=0 // pred_check_branch
    %27 = sbr.rel (0) target = $region29
  $region28: #{cnn_forward.1} parent=0 // pred_region
    _
  $region29: #{cnn_forward.1} parent=0 // pred_fallthru
    _
  // Predicated region
  $region30: #{cnn_forward.1} parent=0 // pred_check
    _
  $region31: #{cnn_forward.1} parent=0 // pred_check_branch
    %29 = sbr.rel (0) target = $region33
  $region32: #{cnn_forward.1} parent=0 // pred_region
    _
  $region33: #{cnn_forward.1} parent=0 // pred_fallthru
    _
  // Predicated region
  $region34: #{cnn_forward.1} parent=0 // pred_check
    _
  $region35: #{cnn_forward.1} parent=0 // pred_check_branch
    %31 = sbr.rel (0) target = $region37
  $region36: #{cnn_forward.1} parent=0 // pred_region
    _
  $region37: #{cnn_forward.1} parent=0 // pred_fallthru
    _
  %v32 = vld [vmem:[%s0] sm:$0xff]
  %v33 = vld [vmem:[%s0 + $0x8] sm:$0xff]
  %v34 = vld [vmem:[%s0 + $0x10] sm:$0xff]
  %v35 = vld [vmem:[%s0 + $0x18] sm:$0xff]
  %v36 = vld [vmem:[%s0 + $0x20] sm:$0xff]
  %v37 = vld [vmem:[%s0 + $0x28] sm:$0xff]
  %v38 = vld [vmem:[%s0 + $0x30] sm:$0xff]
  %v39 = vld [vmem:[%s0 + $0x38] sm:$0xff]
  %v40 = vld [vmem:[%s0 + $0x40] sm:$0xff]
  %v41 = vld [vmem:[%s0 + $0x48] sm:$0xff]
  %v42 = vld [vmem:[%s0 + $0x50] sm:$0xff]
  %v43 = vld [vmem:[%s0 + $0x58] sm:$0xff]
  %v44 = vld [vmem:[%s0 + $0x60] sm:$0xff]
  %v45 = vld [vmem:[%s0 + $0x68] sm:$0xff]
  %v46 = vld [vmem:[%s0 + $0x70] sm:$0xff]
  %v47 = vld [vmem:[%s0 + $0x78] sm:$0xff]
  %v48 = vld [vmem:[%s1] sm:$0xff]
  %v49 = vld [vmem:[%s1 + $0x8] sm:$0xff]
  %v50 = vld [vmem:[%s1 + $0x10] sm:$0xff]
  %v51 = vld [vmem:[%s1 + $0x18] sm:$0xff]
  %v52 = vld [vmem:[%s1 + $0x20] sm:$0xff]
  %v53 = vld [vmem:[%s1 + $0x28] sm:$0xff]
  %v54 = vld [vmem:[%s1 + $0x30] sm:$0xff]
  %v55 = vld [vmem:[%s1 + $0x38] sm:$0xff]
  %s56 = scalar_lea.vmem %s0, 8
  %v57 = vld [vmem:[%s56] sm:$0xff]
  %v58 = vld [vmem:[%s56 + $0x8] sm:$0xff]
  %v59 = vld [vmem:[%s56 + $0x10] sm:$0xff]
  %v60 = vld [vmem:[%s56 + $0x18] sm:$0xff]
  %v61 = vld [vmem:[%s56 + $0x20] sm:$0xff]
  %v62 = vld [vmem:[%s56 + $0x28] sm:$0xff]
  %v63 = vld [vmem:[%s56 + $0x30] sm:$0xff]
  %v64 = vld [vmem:[%s56 + $0x38] sm:$0xff]
  %v65 = vld [vmem:[%s56 + $0x40] sm:$0xff]
  %v66 = vld [vmem:[%s56 + $0x48] sm:$0xff]
  %v67 = vld [vmem:[%s56 + $0x50] sm:$0xff]
  %v68 = vld [vmem:[%s56 + $0x58] sm:$0xff]
  %v69 = vld [vmem:[%s56 + $0x60] sm:$0xff]
  %v70 = vld [vmem:[%s56 + $0x68] sm:$0xff]
  %v71 = vld [vmem:[%s56 + $0x70] sm:$0xff]
  %v72 = vld [vmem:[%s56 + $0x78] sm:$0xff]
  %s73 = scalar_lea.vmem %s1, 64
  %v74 = vld [vmem:[%s73] sm:$0xff]
  %v75 = vld [vmem:[%s73 + $0x8] sm:$0xff]
  %v76 = vld [vmem:[%s73 + $0x10] sm:$0xff]
  %v77 = vld [vmem:[%s73 + $0x18] sm:$0xff]
  %v78 = vld [vmem:[%s73 + $0x20] sm:$0xff]
  %v79 = vld [vmem:[%s73 + $0x28] sm:$0xff]
  %v80 = vld [vmem:[%s73 + $0x30] sm:$0xff]
  %v81 = vld [vmem:[%s73 + $0x38] sm:$0xff]
  %vm82 = vcmask 523264
  %v84 = vsel %vm82, %v57, 0
  %v87 = vsel %vm82, %v58, 0
  %v90 = vsel %vm82, %v59, 0
  %v93 = vsel %vm82, %v60, 0
  %v96 = vsel %vm82, %v61, 0
  %v99 = vsel %vm82, %v62, 0
  %v102 = vsel %vm82, %v63, 0
  %v105 = vsel %vm82, %v64, 0
  %v108 = vsel %vm82, %v65, 0
  %v111 = vsel %vm82, %v66, 0
  %v114 = vsel %vm82, %v67, 0
  %v117 = vsel %vm82, %v68, 0
  %v120 = vsel %vm82, %v69, 0
  %v123 = vsel %vm82, %v70, 0
  %v126 = vsel %vm82, %v71, 0
  %v129 = vsel %vm82, %v72, 0
  %131 = vmatprep.subr.mxu0 0.0
  %132 = vmatpush1.msra.mxu0 %v74
  %133 = vmatprep.subr.mxu0 0.0
  %134 = vmatpush1.msra.mxu0 %v75
  %135 = vmatprep.subr.mxu0 0.0
  %136 = vmatpush1.msra.mxu0 %v76
  %137 = vmatprep.subr.mxu0 0.0
  %138 = vmatpush1.msra.mxu0 %v77
  %139 = vmatprep.subr.mxu0 0.0
  %140 = vmatpush1.msra.mxu0 %v78
  %141 = vmatprep.subr.mxu0 0.0
  %142 = vmatpush1.msra.mxu0 %v79
  %143 = vmatprep.subr.mxu0 0.0
  %144 = vmatpush1.msra.mxu0 %v80
  %145 = vmatprep.subr.mxu0 0.0
  %146 = vmatpush1.msra.mxu0 %v81
  %147 = vmatprep.subr.mxu0 0.0
  %148 = vmatpush1.msra.mxu0 0.0
  %149 = vmatprep.subr.mxu0 0.0
  %150 = vmatpush1.msra.mxu0 0.0
  %151 = vmatprep.subr.mxu0 0.0
  %152 = vmatpush1.msra.mxu0 0.0
  %153 = vmatprep.subr.mxu0 0.0
  %154 = vmatpush1.msra.mxu0 0.0
  %155 = vmatprep.subr.mxu0 0.0
  %156 = vmatpush1.msra.mxu0 0.0
  %157 = vmatprep.subr.mxu0 0.0
  %158 = vmatpush1.msra.mxu0 0.0
  %159 = vmatprep.subr.mxu0 0.0
  %160 = vmatpush1.msra.mxu0 0.0
  %161 = vmatprep.subr.mxu0 0.0
  %162 = vmatpush1.msra.mxu0 0.0
  %163 = vmatprep.subr.mxu0 0.0
  %164 = vmatpush1.msra.mxu0 0.0
  %165 = vmatprep.subr.mxu0 0.0
  %166 = vmatpush1.msra.mxu0 0.0
  %167 = vmatprep.subr.mxu0 0.0
  %168 = vmatpush1.msra.mxu0 0.0
  %169 = vmatprep.subr.mxu0 0.0
  %170 = vmatpush1.msra.mxu0 0.0
  %171 = vmatprep.subr.mxu0 0.0
  %172 = vmatpush1.msra.mxu0 0.0
  %173 = vmatprep.subr.mxu0 0.0
  %174 = vmatpush1.msra.mxu0 0.0
  %175 = vmatprep.subr.mxu0 0.0
  %176 = vmatpush1.msra.mxu0 0.0
  %177 = vmatprep.subr.mxu0 0.0
  %178 = vmatpush1.msra.mxu0 0.0
  %179 = vmatprep.subr.mxu0 0.0
  %180 = vmatpush1.msra.mxu0 0.0
  %181 = vmatprep.subr.mxu0 0.0
  %182 = vmatpush1.msra.mxu0 0.0
  %183 = vmatprep.subr.mxu0 0.0
  %184 = vmatpush1.msra.mxu0 0.0
  %185 = vmatprep.subr.mxu0 0.0
  %186 = vmatpush1.msra.mxu0 0.0
  %187 = vmatprep.subr.mxu0 0.0
  %188 = vmatpush1.msra.mxu0 0.0
  %189 = vmatprep.subr.mxu0 0.0
  %190 = vmatpush1.msra.mxu0 0.0
  %191 = vmatprep.subr.mxu0 0.0
  %192 = vmatpush1.msra.mxu0 0.0
  %193 = vmatprep.subr.mxu0 0.0
  %194 = vmatpush1.msra.mxu0 0.0
  %195 = vmatprep.mubr.f32.mxu0 0.0
  %196 = vmatmul.mubr.f32.gmra.mrb[0].mxu0 %v84
  %v197 = vpop.f32.mrb[0].mxu0
  %v198 = vadd.f32 0.0, %v197
  %v199 = vpop.f32.mrb[0].mxu0
  %200 = vmatprep.mubr.f32.mxu0 0.0
  %201 = vmatmul.mubr.f32.gmra.mrb[0].mxu0 %v87
  %v202 = vpop.f32.mrb[0].mxu0
  %v203 = vadd.f32 0.0, %v202
  %v204 = vpop.f32.mrb[0].mxu0
  %205 = vmatprep.mubr.f32.mxu0 0.0
  %206 = vmatmul.mubr.f32.gmra.mrb[0].mxu0 %v90
  %v207 = vpop.f32.mrb[0].mxu0
  %v208 = vadd.f32 0.0, %v207
  %v209 = vpop.f32.mrb[0].mxu0
  %210 = vmatprep.mubr.f32.mxu0 0.0
  %211 = vmatmul.mubr.f32.gmra.mrb[0].mxu0 %v93
  %v212 = vpop.f32.mrb[0].mxu0
  %v213 = vadd.f32 0.0, %v212
  %v214 = vpop.f32.mrb[0].mxu0
  %215 = vmatprep.mubr.f32.mxu0 0.0
  %216 = vmatmul.mubr.f32.gmra.mrb[0].mxu0 %v96
  %v217 = vpop.f32.mrb[0].mxu0
  %v218 = vadd.f32 0.0, %v217
  %v219 = vpop.f32.mrb[0].mxu0
  %220 = vmatprep.mubr.f32.mxu0 0.0
  %221 = vmatmul.mubr.f32.gmra.mrb[0].mxu0 %v99
  %v222 = vpop.f32.mrb[0].mxu0
  %v223 = vadd.f32 0.0, %v222
  %v224 = vpop.f32.mrb[0].mxu0
  %225 = vmatprep.mubr.f32.mxu0 0.0
  %226 = vmatmul.mubr.f32.gmra.mrb[0].mxu0 %v102
  %v227 = vpop.f32.mrb[0].mxu0
  %v228 = vadd.f32 0.0, %v227
  %v229 = vpop.f32.mrb[0].mxu0
  %230 = vmatprep.mubr.f32.mxu0 0.0
  %231 = vmatmul.mubr.f32.gmra.mrb[0].mxu0 %v105
  %v232 = vpop.f32.mrb[0].mxu0
  %v233 = vadd.f32 0.0, %v232
  %v234 = vpop.f32.mrb[0].mxu0
  %235 = vmatprep.mubr.f32.mxu0 0.0
  %236 = vmatmul.mubr.f32.gmra.mrb[0].mxu0 %v108
  %v237 = vpop.f32.mrb[0].mxu0
  %v238 = vadd.f32 0.0, %v237
  %v239 = vpop.f32.mrb[0].mxu0
  %240 = vmatprep.mubr.f32.mxu0 0.0
  %241 = vmatmul.mubr.f32.gmra.mrb[0].mxu0 %v111
  %v242 = vpop.f32.mrb[0].mxu0
  %v243 = vadd.f32 0.0, %v242
  %v244 = vpop.f32.mrb[0].mxu0
  %245 = vmatprep.mubr.f32.mxu0 0.0
  %246 = vmatmul.mubr.f32.gmra.mrb[0].mxu0 %v114
  %v247 = vpop.f32.mrb[0].mxu0
  %v248 = vadd.f32 0.0, %v247
  %v249 = vpop.f32.mrb[0].mxu0
  %250 = vmatprep.mubr.f32.mxu0 0.0
  %251 = vmatmul.mubr.f32.gmra.mrb[0].mxu0 %v117
  %v252 = vpop.f32.mrb[0].mxu0
  %v253 = vadd.f32 0.0, %v252
  %v254 = vpop.f32.mrb[0].mxu0
  %255 = vmatprep.mubr.f32.mxu0 0.0
  %256 = vmatmul.mubr.f32.gmra.mrb[0].mxu0 %v120
  %v257 = vpop.f32.mrb[0].mxu0
  %v258 = vadd.f32 0.0, %v257
  %v259 = vpop.f32.mrb[0].mxu0
  %260 = vmatprep.mubr.f32.mxu0 0.0
  %261 = vmatmul.mubr.f32.gmra.mrb[0].mxu0 %v123
  %v262 = vpop.f32.mrb[0].mxu0
  %v263 = vadd.f32 0.0, %v262
  %v264 = vpop.f32.mrb[0].mxu0
  %265 = vmatprep.mubr.f32.mxu0 0.0
  %266 = vmatmul.mubr.f32.gmra.mrb[0].mxu0 %v126
  %v267 = vpop.f32.mrb[0].mxu0
  %v268 = vadd.f32 0.0, %v267
  %v269 = vpop.f32.mrb[0].mxu0
  %270 = vmatprep.mubr.f32.mxu0 0.0
  %271 = vmatmul.mubr.f32.gmra.mrb[0].mxu0 %v129
  %v272 = vpop.f32.mrb[0].mxu0
  %v273 = vadd.f32 0.0, %v272
  %v274 = vpop.f32.mrb[0].mxu0
  %275 = vdwg.mxu0
  %v277 = vsel %vm82, %v32, 0
  %v280 = vsel %vm82, %v33, 0
  %v283 = vsel %vm82, %v34, 0
  %v286 = vsel %vm82, %v35, 0
  %v289 = vsel %vm82, %v36, 0
  %v292 = vsel %vm82, %v37, 0
  %v295 = vsel %vm82, %v38, 0
  %v298 = vsel %vm82, %v39, 0
  %v301 = vsel %vm82, %v40, 0
  %v304 = vsel %vm82, %v41, 0
  %v307 = vsel %vm82, %v42, 0
  %v310 = vsel %vm82, %v43, 0
  %v313 = vsel %vm82, %v44, 0
  %v316 = vsel %vm82, %v45, 0
  %v319 = vsel %vm82, %v46, 0
  %v322 = vsel %vm82, %v47, 0
  %324 = vmatprep.subr.mxu0 0.0
  %325 = vmatpush1.msra.mxu0 %v48
  %326 = vmatprep.subr.mxu0 0.0
  %327 = vmatpush1.msra.mxu0 %v49
  %328 = vmatprep.subr.mxu0 0.0
  %329 = vmatpush1.msra.mxu0 %v50
  %330 = vmatprep.subr.mxu0 0.0
  %331 = vmatpush1.msra.mxu0 %v51
  %332 = vmatprep.subr.mxu0 0.0
  %333 = vmatpush1.msra.mxu0 %v52
  %334 = vmatprep.subr.mxu0 0.0
  %335 = vmatpush1.msra.mxu0 %v53
  %336 = vmatprep.subr.mxu0 0.0
  %337 = vmatpush1.msra.mxu0 %v54
  %338 = vmatprep.subr.mxu0 0.0
  %339 = vmatpush1.msra.mxu0 %v55
  %340 = vmatprep.subr.mxu0 0.0
  %341 = vmatpush1.msra.mxu0 0.0
  %342 = vmatprep.subr.mxu0 0.0
  %343 = vmatpush1.msra.mxu0 0.0
  %344 = vmatprep.subr.mxu0 0.0
  %345 = vmatpush1.msra.mxu0 0.0
  %346 = vmatprep.subr.mxu0 0.0
  %347 = vmatpush1.msra.mxu0 0.0
  %348 = vmatprep.subr.mxu0 0.0
  %349 = vmatpush1.msra.mxu0 0.0
  %350 = vmatprep.subr.mxu0 0.0
  %351 = vmatpush1.msra.mxu0 0.0
  %352 = vmatprep.subr.mxu0 0.0
  %353 = vmatpush1.msra.mxu0 0.0
  %354 = vmatprep.subr.mxu0 0.0
  %355 = vmatpush1.msra.mxu0 0.0
  %356 = vmatprep.subr.mxu0 0.0
  %357 = vmatpush1.msra.mxu0 0.0
  %358 = vmatprep.subr.mxu0 0.0
  %359 = vmatpush1.msra.mxu0 0.0
  %360 = vmatprep.subr.mxu0 0.0
  %361 = vmatpush1.msra.mxu0 0.0
  %362 = vmatprep.subr.mxu0 0.0
  %363 = vmatpush1.msra.mxu0 0.0
  %364 = vmatprep.subr.mxu0 0.0
  %365 = vmatpush1.msra.mxu0 0.0
  %366 = vmatprep.subr.mxu0 0.0
  %367 = vmatpush1.msra.mxu0 0.0
  %368 = vmatprep.subr.mxu0 0.0
  %369 = vmatpush1.msra.mxu0 0.0
  %370 = vmatprep.subr.mxu0 0.0
  %371 = vmatpush1.msra.mxu0 0.0
  %372 = vmatprep.subr.mxu0 0.0
  %373 = vmatpush1.msra.mxu0 0.0
  %374 = vmatprep.subr.mxu0 0.0
  %375 = vmatpush1.msra.mxu0 0.0
  %376 = vmatprep.subr.mxu0 0.0
  %377 = vmatpush1.msra.mxu0 0.0
  %378 = vmatprep.subr.mxu0 0.0
  %379 = vmatpush1.msra.mxu0 0.0
  %380 = vmatprep.subr.mxu0 0.0
  %381 = vmatpush1.msra.mxu0 0.0
  %382 = vmatprep.subr.mxu0 0.0
  %383 = vmatpush1.msra.mxu0 0.0
  %384 = vmatprep.subr.mxu0 0.0
  %385 = vmatpush1.msra.mxu0 0.0
  %386 = vmatprep.subr.mxu0 0.0
  %387 = vmatpush1.msra.mxu0 0.0
  %388 = vmatprep.mubr.f32.mxu0 0.0
  %389 = vmatmul.mubr.f32.gmra.mrb[0].mxu0 %v277
  %v390 = vpop.f32.mrb[0].mxu0
  %v391 = vadd.f32 %v198, %v390
  %v392 = vpop.f32.mrb[0].mxu0
  %393 = vmatprep.mubr.f32.mxu0 0.0
  %394 = vmatmul.mubr.f32.gmra.mrb[0].mxu0 %v280
  %v395 = vpop.f32.mrb[0].mxu0
  %v396 = vadd.f32 %v203, %v395
  %v397 = vpop.f32.mrb[0].mxu0
  %398 = vmatprep.mubr.f32.mxu0 0.0
  %399 = vmatmul.mubr.f32.gmra.mrb[0].mxu0 %v283
  %v400 = vpop.f32.mrb[0].mxu0
  %v401 = vadd.f32 %v208, %v400
  %v402 = vpop.f32.mrb[0].mxu0
  %403 = vmatprep.mubr.f32.mxu0 0.0
  %404 = vmatmul.mubr.f32.gmra.mrb[0].mxu0 %v286
  %v405 = vpop.f32.mrb[0].mxu0
  %v406 = vadd.f32 %v213, %v405
  %v407 = vpop.f32.mrb[0].mxu0
  %408 = vmatprep.mubr.f32.mxu0 0.0
  %409 = vmatmul.mubr.f32.gmra.mrb[0].mxu0 %v289
  %v410 = vpop.f32.mrb[0].mxu0
  %v411 = vadd.f32 %v218, %v410
  %v412 = vpop.f32.mrb[0].mxu0
  %413 = vmatprep.mubr.f32.mxu0 0.0
  %414 = vmatmul.mubr.f32.gmra.mrb[0].mxu0 %v292
  %v415 = vpop.f32.mrb[0].mxu0
  %v416 = vadd.f32 %v223, %v415
  %v417 = vpop.f32.mrb[0].mxu0
  %418 = vmatprep.mubr.f32.mxu0 0.0
  %419 = vmatmul.mubr.f32.gmra.mrb[0].mxu0 %v295
  %v420 = vpop.f32.mrb[0].mxu0
  %v421 = vadd.f32 %v228, %v420
  %v422 = vpop.f32.mrb[0].mxu0
  %423 = vmatprep.mubr.f32.mxu0 0.0
  %424 = vmatmul.mubr.f32.gmra.mrb[0].mxu0 %v298
  %v425 = vpop.f32.mrb[0].mxu0
  %v426 = vadd.f32 %v233, %v425
  %v427 = vpop.f32.mrb[0].mxu0
  %428 = vmatprep.mubr.f32.mxu0 0.0
  %429 = vmatmul.mubr.f32.gmra.mrb[0].mxu0 %v301
  %v430 = vpop.f32.mrb[0].mxu0
  %v431 = vadd.f32 %v238, %v430
  %v432 = vpop.f32.mrb[0].mxu0
  %433 = vmatprep.mubr.f32.mxu0 0.0
  %434 = vmatmul.mubr.f32.gmra.mrb[0].mxu0 %v304
  %v435 = vpop.f32.mrb[0].mxu0
  %v436 = vadd.f32 %v243, %v435
  %v437 = vpop.f32.mrb[0].mxu0
  %438 = vmatprep.mubr.f32.mxu0 0.0
  %439 = vmatmul.mubr.f32.gmra.mrb[0].mxu0 %v307
  %v440 = vpop.f32.mrb[0].mxu0
  %v441 = vadd.f32 %v248, %v440
  %v442 = vpop.f32.mrb[0].mxu0
  %443 = vmatprep.mubr.f32.mxu0 0.0
  %444 = vmatmul.mubr.f32.gmra.mrb[0].mxu0 %v310
  %v445 = vpop.f32.mrb[0].mxu0
  %v446 = vadd.f32 %v253, %v445
  %v447 = vpop.f32.mrb[0].mxu0
  %448 = vmatprep.mubr.f32.mxu0 0.0
  %449 = vmatmul.mubr.f32.gmra.mrb[0].mxu0 %v313
  %v450 = vpop.f32.mrb[0].mxu0
  %v451 = vadd.f32 %v258, %v450
  %v452 = vpop.f32.mrb[0].mxu0
  %453 = vmatprep.mubr.f32.mxu0 0.0
  %454 = vmatmul.mubr.f32.gmra.mrb[0].mxu0 %v316
  %v455 = vpop.f32.mrb[0].mxu0
  %v456 = vadd.f32 %v263, %v455
  %v457 = vpop.f32.mrb[0].mxu0
  %458 = vmatprep.mubr.f32.mxu0 0.0
  %459 = vmatmul.mubr.f32.gmra.mrb[0].mxu0 %v319
  %v460 = vpop.f32.mrb[0].mxu0
  %v461 = vadd.f32 %v268, %v460
  %v462 = vpop.f32.mrb[0].mxu0
  %463 = vmatprep.mubr.f32.mxu0 0.0
  %464 = vmatmul.mubr.f32.gmra.mrb[0].mxu0 %v322
  %v465 = vpop.f32.mrb[0].mxu0
  %v466 = vadd.f32 %v273, %v465
  %v467 = vpop.f32.mrb[0].mxu0
  %468 = vdwg.mxu0
  %s469 = scalar_lea.vmem %s0, 16
  %v470 = vld [vmem:[%s469] sm:$0xff]
  %v471 = vld [vmem:[%s469 + $0x8] sm:$0xff]
  %v472 = vld [vmem:[%s469 + $0x10] sm:$0xff]
  %v473 = vld [vmem:[%s469 + $0x18] sm:$0xff]
  %v474 = vld [vmem:[%s469 + $0x20] sm:$0xff]
  %v475 = vld [vmem:[%s469 + $0x28] sm:$0xff]
  %v476 = vld [vmem:[%s469 + $0x30] sm:$0xff]
  %v477 = vld [vmem:[%s469 + $0x38] sm:$0xff]
  %v478 = vld [vmem:[%s469 + $0x40] sm:$0xff]
  %v479 = vld [vmem:[%s469 + $0x48] sm:$0xff]
  %v480 = vld [vmem:[%s469 + $0x50] sm:$0xff]
  %v481 = vld [vmem:[%s469 + $0x58] sm:$0xff]
  %v482 = vld [vmem:[%s469 + $0x60] sm:$0xff]
  %v483 = vld [vmem:[%s469 + $0x68] sm:$0xff]
  %v484 = vld [vmem:[%s469 + $0x70] sm:$0xff]
  %v485 = vld [vmem:[%s469 + $0x78] sm:$0xff]
  %s486 = scalar_lea.vmem %s1, 128
  %v487 = vld [vmem:[%s486] sm:$0xff]
  %v488 = vld [vmem:[%s486 + $0x8] sm:$0xff]
  %v489 = vld [vmem:[%s486 + $0x10] sm:$0xff]
  %v490 = vld [vmem:[%s486 + $0x18] sm:$0xff]
  %v491 = vld [vmem:[%s486 + $0x20] sm:$0xff]
  %v492 = vld [vmem:[%s486 + $0x28] sm:$0xff]
  %v493 = vld [vmem:[%s486 + $0x30] sm:$0xff]
  %v494 = vld [vmem:[%s486 + $0x38] sm:$0xff]
  %v496 = vsel %vm82, %v470, 0
  %v499 = vsel %vm82, %v471, 0
  %v502 = vsel %vm82, %v472, 0
  %v505 = vsel %vm82, %v473, 0
  %v508 = vsel %vm82, %v474, 0
  %v511 = vsel %vm82, %v475, 0
  %v514 = vsel %vm82, %v476, 0
  %v517 = vsel %vm82, %v477, 0
  %v520 = vsel %vm82, %v478, 0
  %v523 = vsel %vm82, %v479, 0
  %v526 = vsel %vm82, %v480, 0
  %v529 = vsel %vm82, %v481, 0
  %v532 = vsel %vm82, %v482, 0
  %v535 = vsel %vm82, %v483, 0
  %v538 = vsel %vm82, %v484, 0
  %v541 = vsel %vm82, %v485, 0
  %543 = vmatprep.subr.mxu0 0.0
  %544 = vmatpush1.msra.mxu0 %v487
  %545 = vmatprep.subr.mxu0 0.0
  %546 = vmatpush1.msra.mxu0 %v488
  %547 = vmatprep.subr.mxu0 0.0
  %548 = vmatpush1.msra.mxu0 %v489
  %549 = vmatprep.subr.mxu0 0.0
  %550 = vmatpush1.msra.mxu0 %v490
  %551 = vmatprep.subr.mxu0 0.0
  %552 = vmatpush1.msra.mxu0 %v491
  %553 = vmatprep.subr.mxu0 0.0
  %554 = vmatpush1.msra.mxu0 %v492
  %555 = vmatprep.subr.mxu0 0.0
  %556 = vmatpush1.msra.mxu0 %v493
  %557 = vmatprep.subr.mxu0 0.0
  %558 = vmatpush1.msra.mxu0 %v494
  %559 = vmatprep.subr.mxu0 0.0
  %560 = vmatpush1.msra.mxu0 0.0
  %561 = vmatprep.subr.mxu0 0.0
  %562 = vmatpush1.msra.mxu0 0.0
  %563 = vmatprep.subr.mxu0 0.0
  %564 = vmatpush1.msra.mxu0 0.0
  %565 = vmatprep.subr.mxu0 0.0
  %566 = vmatpush1.msra.mxu0 0.0
  %567 = vmatprep.subr.mxu0 0.0
  %568 = vmatpush1.msra.mxu0 0.0
  %569 = vmatprep.subr.mxu0 0.0
  %570 = vmatpush1.msra.mxu0 0.0
  %571 = vmatprep.subr.mxu0 0.0
  %572 = vmatpush1.msra.mxu0 0.0
  %573 = vmatprep.subr.mxu0 0.0
  %574 = vmatpush1.msra.mxu0 0.0
  %575 = vmatprep.subr.mxu0 0.0
  %576 = vmatpush1.msra.mxu0 0.0
  %577 = vmatprep.subr.mxu0 0.0
  %578 = vmatpush1.msra.mxu0 0.0
  %579 = vmatprep.subr.mxu0 0.0
  %580 = vmatpush1.msra.mxu0 0.0
  %581 = vmatprep.subr.mxu0 0.0
  %582 = vmatpush1.msra.mxu0 0.0
  %583 = vmatprep.subr.mxu0 0.0
  %584 = vmatpush1.msra.mxu0 0.0
  %585 = vmatprep.subr.mxu0 0.0
  %586 = vmatpush1.msra.mxu0 0.0
  %587 = vmatprep.subr.mxu0 0.0
  %588 = vmatpush1.msra.mxu0 0.0
  %589 = vmatprep.subr.mxu0 0.0
  %590 = vmatpush1.msra.mxu0 0.0
  %591 = vmatprep.subr.mxu0 0.0
  %592 = vmatpush1.msra.mxu0 0.0
  %593 = vmatprep.subr.mxu0 0.0
  %594 = vmatpush1.msra.mxu0 0.0
  %595 = vmatprep.subr.mxu0 0.0
  %596 = vmatpush1.msra.mxu0 0.0
  %597 = vmatprep.subr.mxu0 0.0
  %598 = vmatpush1.msra.mxu0 0.0
  %599 = vmatprep.subr.mxu0 0.0
  %600 = vmatpush1.msra.mxu0 0.0
  %601 = vmatprep.subr.mxu0 0.0
  %602 = vmatpush1.msra.mxu0 0.0
  %603 = vmatprep.subr.mxu0 0.0
  %604 = vmatpush1.msra.mxu0 0.0
  %605 = vmatprep.subr.mxu0 0.0
  %606 = vmatpush1.msra.mxu0 0.0
  %607 = vmatprep.mubr.f32.mxu0 0.0
  %608 = vmatmul.mubr.f32.gmra.mrb[0].mxu0 %v496
  %v609 = vpop.f32.mrb[0].mxu0
  %v610 = vadd.f32 0.0, %v609
  %v611 = vpop.f32.mrb[0].mxu0
  %612 = vmatprep.mubr.f32.mxu0 0.0
  %613 = vmatmul.mubr.f32.gmra.mrb[0].mxu0 %v499
  %v614 = vpop.f32.mrb[0].mxu0
  %v615 = vadd.f32 0.0, %v614
  %v616 = vpop.f32.mrb[0].mxu0
  %617 = vmatprep.mubr.f32.mxu0 0.0
  %618 = vmatmul.mubr.f32.gmra.mrb[0].mxu0 %v502
  %v619 = vpop.f32.mrb[0].mxu0
  %v620 = vadd.f32 0.0, %v619
  %v621 = vpop.f32.mrb[0].mxu0
  %622 = vmatprep.mubr.f32.mxu0 0.0
  %623 = vmatmul.mubr.f32.gmra.mrb[0].mxu0 %v505
  %v624 = vpop.f32.mrb[0].mxu0
  %v625 = vadd.f32 0.0, %v624
  %v626 = vpop.f32.mrb[0].mxu0
  %627 = vmatprep.mubr.f32.mxu0 0.0
  %628 = vmatmul.mubr.f32.gmra.mrb[0].mxu0 %v508
  %v629 = vpop.f32.mrb[0].mxu0
  %v630 = vadd.f32 0.0, %v629
  %v631 = vpop.f32.mrb[0].mxu0
  %632 = vmatprep.mubr.f32.mxu0 0.0
  %633 = vmatmul.mubr.f32.gmra.mrb[0].mxu0 %v511
  %v634 = vpop.f32.mrb[0].mxu0
  %v635 = vadd.f32 0.0, %v634
  %v636 = vpop.f32.mrb[0].mxu0
  %637 = vmatprep.mubr.f32.mxu0 0.0
  %638 = vmatmul.mubr.f32.gmra.mrb[0].mxu0 %v514
  %v639 = vpop.f32.mrb[0].mxu0
  %v640 = vadd.f32 0.0, %v639
  %v641 = vpop.f32.mrb[0].mxu0
  %642 = vmatprep.mubr.f32.mxu0 0.0
  %643 = vmatmul.mubr.f32.gmra.mrb[0].mxu0 %v517
  %v644 = vpop.f32.mrb[0].mxu0
  %v645 = vadd.f32 0.0, %v644
  %v646 = vpop.f32.mrb[0].mxu0
  %647 = vmatprep.mubr.f32.mxu0 0.0
  %648 = vmatmul.mubr.f32.gmra.mrb[0].mxu0 %v520
  %v649 = vpop.f32.mrb[0].mxu0
  %v650 = vadd.f32 0.0, %v649
  %v651 = vpop.f32.mrb[0].mxu0
  %652 = vmatprep.mubr.f32.mxu0 0.0
  %653 = vmatmul.mubr.f32.gmra.mrb[0].mxu0 %v523
  %v654 = vpop.f32.mrb[0].mxu0
  %v655 = vadd.f32 0.0, %v654
  %v656 = vpop.f32.mrb[0].mxu0
  %657 = vmatprep.mubr.f32.mxu0 0.0
  %658 = vmatmul.mubr.f32.gmra.mrb[0].mxu0 %v526
  %v659 = vpop.f32.mrb[0].mxu0
  %v660 = vadd.f32 0.0, %v659
  %v661 = vpop.f32.mrb[0].mxu0
  %662 = vmatprep.mubr.f32.mxu0 0.0
  %663 = vmatmul.mubr.f32.gmra.mrb[0].mxu0 %v529
  %v664 = vpop.f32.mrb[0].mxu0
  %v665 = vadd.f32 0.0, %v664
  %v666 = vpop.f32.mrb[0].mxu0
  %667 = vmatprep.mubr.f32.mxu0 0.0
  %668 = vmatmul.mubr.f32.gmra.mrb[0].mxu0 %v532
  %v669 = vpop.f32.mrb[0].mxu0
  %v670 = vadd.f32 0.0, %v669
  %v671 = vpop.f32.mrb[0].mxu0
  %672 = vmatprep.mubr.f32.mxu0 0.0
  %673 = vmatmul.mubr.f32.gmra.mrb[0].mxu0 %v535
  %v674 = vpop.f32.mrb[0].mxu0
  %v675 = vadd.f32 0.0, %v674
  %v676 = vpop.f32.mrb[0].mxu0
  %677 = vmatprep.mubr.f32.mxu0 0.0
  %678 = vmatmul.mubr.f32.gmra.mrb[0].mxu0 %v538
  %v679 = vpop.f32.mrb[0].mxu0
  %v680 = vadd.f32 0.0, %v679
  %v681 = vpop.f32.mrb[0].mxu0
  %682 = vmatprep.mubr.f32.mxu0 0.0
  %683 = vmatmul.mubr.f32.gmra.mrb[0].mxu0 %v541
  %v684 = vpop.f32.mrb[0].mxu0
  %v685 = vadd.f32 0.0, %v684
  %v686 = vpop.f32.mrb[0].mxu0
  %687 = vdwg.mxu0
  %v688 = vadd.f32 %v391, %v610
  %v689 = vadd.f32 %v396, %v615
  %v690 = vadd.f32 %v401, %v620
  %v691 = vadd.f32 %v406, %v625
  %v692 = vadd.f32 %v411, %v630
  %v693 = vadd.f32 %v416, %v635
  %v694 = vadd.f32 %v421, %v640
  %v695 = vadd.f32 %v426, %v645
  %v696 = vadd.f32 %v431, %v650
  %v697 = vadd.f32 %v436, %v655
  %v698 = vadd.f32 %v441, %v660
  %v699 = vadd.f32 %v446, %v665
  %v700 = vadd.f32 %v451, %v670
  %v701 = vadd.f32 %v456, %v675
  %v702 = vadd.f32 %v461, %v680
  %v703 = vadd.f32 %v466, %v685
  %v704 = vld [vmem:[%s2] sm:$0x1]
  %v706 = vlaneseq
  %v707 = vshrl.u32 %v706, 7
  %v708 = vsub.s32 0, %v707
  %v709 = vrot.slane %v704, %v708
  %v711 = vadd.f32 %v688, %v709
  %v712 = vadd.f32 %v689, %v709
  %v713 = vadd.f32 %v690, %v709
  %v714 = vadd.f32 %v691, %v709
  %v715 = vadd.f32 %v692, %v709
  %v716 = vadd.f32 %v693, %v709
  %v717 = vadd.f32 %v694, %v709
  %v718 = vadd.f32 %v695, %v709
  %v719 = vadd.f32 %v696, %v709
  %v720 = vadd.f32 %v697, %v709
  %v721 = vadd.f32 %v698, %v709
  %v722 = vadd.f32 %v699, %v709
  %v723 = vadd.f32 %v700, %v709
  %v724 = vadd.f32 %v701, %v709
  %v725 = vadd.f32 %v702, %v709
  %v726 = vadd.f32 %v703, %v709
  %v727 = vmax.f32 %v711, 0.0
  %v728 = vmax.f32 %v712, 0.0
  %v729 = vmax.f32 %v713, 0.0
  %v730 = vmax.f32 %v714, 0.0
  %v731 = vmax.f32 %v715, 0.0
  %v732 = vmax.f32 %v716, 0.0
  %v733 = vmax.f32 %v717, 0.0
  %v734 = vmax.f32 %v718, 0.0
  %v735 = vmax.f32 %v719, 0.0
  %v736 = vmax.f32 %v720, 0.0
  %v737 = vmax.f32 %v721, 0.0
  %v738 = vmax.f32 %v722, 0.0
  %v739 = vmax.f32 %v723, 0.0
  %v740 = vmax.f32 %v724, 0.0
  %v741 = vmax.f32 %v725, 0.0
  %v742 = vmax.f32 %v726, 0.0
  %743 = vst [vmem:[#allocation2] sm:$0xff] 0.0
  %s744 = scalar_lea.vmem [#allocation2], 136
  %745 = vst [vmem:[%s744] sm:$0xff] 0.0
  %s746 = scalar_lea.vmem [#allocation2], 8
  %747 = vst [vmem:[%s746] sm:$0xff] %v727
  %748 = vst [vmem:[%s746 + $0x8] sm:$0xff] %v728
  %749 = vst [vmem:[%s746 + $0x10] sm:$0xff] %v729
  %750 = vst [vmem:[%s746 + $0x18] sm:$0xff] %v730
  %751 = vst [vmem:[%s746 + $0x20] sm:$0xff] %v731
  %752 = vst [vmem:[%s746 + $0x28] sm:$0xff] %v732
  %753 = vst [vmem:[%s746 + $0x30] sm:$0xff] %v733
  %754 = vst [vmem:[%s746 + $0x38] sm:$0xff] %v734
  %755 = vst [vmem:[%s746 + $0x40] sm:$0xff] %v735
  %756 = vst [vmem:[%s746 + $0x48] sm:$0xff] %v736
  %757 = vst [vmem:[%s746 + $0x50] sm:$0xff] %v737
  %758 = vst [vmem:[%s746 + $0x58] sm:$0xff] %v738
  %759 = vst [vmem:[%s746 + $0x60] sm:$0xff] %v739
  %760 = vst [vmem:[%s746 + $0x68] sm:$0xff] %v740
  %761 = vst [vmem:[%s746 + $0x70] sm:$0xff] %v741
  %762 = vst [vmem:[%s746 + $0x78] sm:$0xff] %v742
  %v763 = vld [vmem:[#allocation2] sm:$0xff]
  %v764 = vld [vmem:[#allocation2 + $0x8] sm:$0xff]
  %v765 = vld [vmem:[#allocation2 + $0x10] sm:$0xff]
  %v766 = vld [vmem:[#allocation2 + $0x18] sm:$0xff]
  %v767 = vld [vmem:[#allocation2 + $0x20] sm:$0xff]
  %v768 = vld [vmem:[#allocation2 + $0x28] sm:$0xff]
  %v769 = vld [vmem:[#allocation2 + $0x30] sm:$0xff]
  %v770 = vld [vmem:[#allocation2 + $0x38] sm:$0xff]
  %v771 = vld [vmem:[#allocation2 + $0x40] sm:$0xff]
  %v772 = vld [vmem:[#allocation2 + $0x48] sm:$0xff]
  %v773 = vld [vmem:[#allocation2 + $0x50] sm:$0xff]
  %v774 = vld [vmem:[#allocation2 + $0x58] sm:$0xff]
  %v775 = vld [vmem:[#allocation2 + $0x60] sm:$0xff]
  %v776 = vld [vmem:[#allocation2 + $0x68] sm:$0xff]
  %v777 = vld [vmem:[#allocation2 + $0x70] sm:$0xff]
  %v778 = vld [vmem:[#allocation2 + $0x78] sm:$0xff]
  %v779 = vld [vmem:[%s3] sm:$0xff]
  %v780 = vld [vmem:[%s3 + $0x8] sm:$0xff]
  %v781 = vld [vmem:[%s3 + $0x10] sm:$0xff]
  %v782 = vld [vmem:[%s3 + $0x18] sm:$0xff]
  %v783 = vld [vmem:[%s3 + $0x20] sm:$0xff]
  %v784 = vld [vmem:[%s3 + $0x28] sm:$0xff]
  %v785 = vld [vmem:[%s3 + $0x30] sm:$0xff]
  %v786 = vld [vmem:[%s3 + $0x38] sm:$0xff]
  %v787 = vld [vmem:[%s3 + $0x40] sm:$0xff]
  %v788 = vld [vmem:[%s3 + $0x48] sm:$0xff]
  %v789 = vld [vmem:[%s3 + $0x50] sm:$0xff]
  %v790 = vld [vmem:[%s3 + $0x58] sm:$0xff]
  %v791 = vld [vmem:[%s3 + $0x60] sm:$0xff]
  %v792 = vld [vmem:[%s3 + $0x68] sm:$0xff]
  %v793 = vld [vmem:[%s3 + $0x70] sm:$0xff]
  %v794 = vld [vmem:[%s3 + $0x78] sm:$0xff]
  %v795 = vld [vmem:[%s746] sm:$0xff]
  %v796 = vld [vmem:[%s746 + $0x8] sm:$0xff]
  %v797 = vld [vmem:[%s746 + $0x10] sm:$0xff]
  %v798 = vld [vmem:[%s746 + $0x18] sm:$0xff]
  %v799 = vld [vmem:[%s746 + $0x20] sm:$0xff]
  %v800 = vld [vmem:[%s746 + $0x28] sm:$0xff]
  %v801 = vld [vmem:[%s746 + $0x30] sm:$0xff]
  %v802 = vld [vmem:[%s746 + $0x38] sm:$0xff]
  %v803 = vld [vmem:[%s746 + $0x40] sm:$0xff]
  %v804 = vld [vmem:[%s746 + $0x48] sm:$0xff]
  %v805 = vld [vmem:[%s746 + $0x50] sm:$0xff]
  %v806 = vld [vmem:[%s746 + $0x58] sm:$0xff]
  %v807 = vld [vmem:[%s746 + $0x60] sm:$0xff]
  %v808 = vld [vmem:[%s746 + $0x68] sm:$0xff]
  %v809 = vld [vmem:[%s746 + $0x70] sm:$0xff]
  %v810 = vld [vmem:[%s746 + $0x78] sm:$0xff]
  %s811 = scalar_lea.vmem %s3, 128
  %v812 = vld [vmem:[%s811] sm:$0xff]
  %v813 = vld [vmem:[%s811 + $0x8] sm:$0xff]
  %v814 = vld [vmem:[%s811 + $0x10] sm:$0xff]
  %v815 = vld [vmem:[%s811 + $0x18] sm:$0xff]
  %v816 = vld [vmem:[%s811 + $0x20] sm:$0xff]
  %v817 = vld [vmem:[%s811 + $0x28] sm:$0xff]
  %v818 = vld [vmem:[%s811 + $0x30] sm:$0xff]
  %v819 = vld [vmem:[%s811 + $0x38] sm:$0xff]
  %v820 = vld [vmem:[%s811 + $0x40] sm:$0xff]
  %v821 = vld [vmem:[%s811 + $0x48] sm:$0xff]
  %v822 = vld [vmem:[%s811 + $0x50] sm:$0xff]
  %v823 = vld [vmem:[%s811 + $0x58] sm:$0xff]
  %v824 = vld [vmem:[%s811 + $0x60] sm:$0xff]
  %v825 = vld [vmem:[%s811 + $0x68] sm:$0xff]
  %v826 = vld [vmem:[%s811 + $0x70] sm:$0xff]
  %v827 = vld [vmem:[%s811 + $0x78] sm:$0xff]
  %828 = vmatprep.subr.mxu0 0.0
  %829 = vmatpush1.msra.mxu0 %v812
  %830 = vmatprep.subr.mxu0 0.0
  %831 = vmatpush1.msra.mxu0 %v813
  %832 = vmatprep.subr.mxu0 0.0
  %833 = vmatpush1.msra.mxu0 %v814
  %834 = vmatprep.subr.mxu0 0.0
  %835 = vmatpush1.msra.mxu0 %v815
  %836 = vmatprep.subr.mxu0 0.0
  %837 = vmatpush1.msra.mxu0 %v816
  %838 = vmatprep.subr.mxu0 0.0
  %839 = vmatpush1.msra.mxu0 %v817
  %840 = vmatprep.subr.mxu0 0.0
  %841 = vmatpush1.msra.mxu0 %v818
  %842 = vmatprep.subr.mxu0 0.0
  %843 = vmatpush1.msra.mxu0 %v819
  %844 = vmatprep.subr.mxu0 0.0
  %845 = vmatpush1.msra.mxu0 %v820
  %846 = vmatprep.subr.mxu0 0.0
  %847 = vmatpush1.msra.mxu0 %v821
  %848 = vmatprep.subr.mxu0 0.0
  %849 = vmatpush1.msra.mxu0 %v822
  %850 = vmatprep.subr.mxu0 0.0
  %851 = vmatpush1.msra.mxu0 %v823
  %852 = vmatprep.subr.mxu0 0.0
  %853 = vmatpush1.msra.mxu0 %v824
  %854 = vmatprep.subr.mxu0 0.0
  %855 = vmatpush1.msra.mxu0 %v825
  %856 = vmatprep.subr.mxu0 0.0
  %857 = vmatpush1.msra.mxu0 %v826
  %858 = vmatprep.subr.mxu0 0.0
  %859 = vmatpush1.msra.mxu0 %v827
  %860 = vmatprep.subr.mxu0 0.0
  %861 = vmatpush1.msra.mxu0 0.0
  %862 = vmatprep.subr.mxu0 0.0
  %863 = vmatpush1.msra.mxu0 0.0
  %864 = vmatprep.subr.mxu0 0.0
  %865 = vmatpush1.msra.mxu0 0.0
  %866 = vmatprep.subr.mxu0 0.0
  %867 = vmatpush1.msra.mxu0 0.0
  %868 = vmatprep.subr.mxu0 0.0
  %869 = vmatpush1.msra.mxu0 0.0
  %870 = vmatprep.subr.mxu0 0.0
  %871 = vmatpush1.msra.mxu0 0.0
  %872 = vmatprep.subr.mxu0 0.0
  %873 = vmatpush1.msra.mxu0 0.0
  %874 = vmatprep.subr.mxu0 0.0
  %875 = vmatpush1.msra.mxu0 0.0
  %876 = vmatprep.subr.mxu0 0.0
  %877 = vmatpush1.msra.mxu0 0.0
  %878 = vmatprep.subr.mxu0 0.0
  %879 = vmatpush1.msra.mxu0 0.0
  %880 = vmatprep.subr.mxu0 0.0
  %881 = vmatpush1.msra.mxu0 0.0
  %882 = vmatprep.subr.mxu0 0.0
  %883 = vmatpush1.msra.mxu0 0.0
  %884 = vmatprep.subr.mxu0 0.0
  %885 = vmatpush1.msra.mxu0 0.0
  %886 = vmatprep.subr.mxu0 0.0
  %887 = vmatpush1.msra.mxu0 0.0
  %888 = vmatprep.subr.mxu0 0.0
  %889 = vmatpush1.msra.mxu0 0.0
  %890 = vmatprep.subr.mxu0 0.0
  %891 = vmatpush1.msra.mxu0 0.0
  %892 = vmatprep.mubr.f32.mxu0 0.0
  %893 = vmatmul.mubr.f32.gmra.mrb[0].mxu0 %v795
  %v894 = vpop.f32.mrb[0].mxu0
  %v895 = vadd.f32 0.0, %v894
  %v896 = vpop.f32.mrb[0].mxu0
  %897 = vmatprep.mubr.f32.mxu0 0.0
  %898 = vmatmul.mubr.f32.gmra.mrb[0].mxu0 %v796
  %v899 = vpop.f32.mrb[0].mxu0
  %v900 = vadd.f32 0.0, %v899
  %v901 = vpop.f32.mrb[0].mxu0
  %902 = vmatprep.mubr.f32.mxu0 0.0
  %903 = vmatmul.mubr.f32.gmra.mrb[0].mxu0 %v797
  %v904 = vpop.f32.mrb[0].mxu0
  %v905 = vadd.f32 0.0, %v904
  %v906 = vpop.f32.mrb[0].mxu0
  %907 = vmatprep.mubr.f32.mxu0 0.0
  %908 = vmatmul.mubr.f32.gmra.mrb[0].mxu0 %v798
  %v909 = vpop.f32.mrb[0].mxu0
  %v910 = vadd.f32 0.0, %v909
  %v911 = vpop.f32.mrb[0].mxu0
  %912 = vmatprep.mubr.f32.mxu0 0.0
  %913 = vmatmul.mubr.f32.gmra.mrb[0].mxu0 %v799
  %v914 = vpop.f32.mrb[0].mxu0
  %v915 = vadd.f32 0.0, %v914
  %v916 = vpop.f32.mrb[0].mxu0
  %917 = vmatprep.mubr.f32.mxu0 0.0
  %918 = vmatmul.mubr.f32.gmra.mrb[0].mxu0 %v800
  %v919 = vpop.f32.mrb[0].mxu0
  %v920 = vadd.f32 0.0, %v919
  %v921 = vpop.f32.mrb[0].mxu0
  %922 = vmatprep.mubr.f32.mxu0 0.0
  %923 = vmatmul.mubr.f32.gmra.mrb[0].mxu0 %v801
  %v924 = vpop.f32.mrb[0].mxu0
  %v925 = vadd.f32 0.0, %v924
  %v926 = vpop.f32.mrb[0].mxu0
  %927 = vmatprep.mubr.f32.mxu0 0.0
  %928 = vmatmul.mubr.f32.gmra.mrb[0].mxu0 %v802
  %v929 = vpop.f32.mrb[0].mxu0
  %v930 = vadd.f32 0.0, %v929
  %v931 = vpop.f32.mrb[0].mxu0
  %932 = vmatprep.mubr.f32.mxu0 0.0
  %933 = vmatmul.mubr.f32.gmra.mrb[0].mxu0 %v803
  %v934 = vpop.f32.mrb[0].mxu0
  %v935 = vadd.f32 0.0, %v934
  %v936 = vpop.f32.mrb[0].mxu0
  %937 = vmatprep.mubr.f32.mxu0 0.0
  %938 = vmatmul.mubr.f32.gmra.mrb[0].mxu0 %v804
  %v939 = vpop.f32.mrb[0].mxu0
  %v940 = vadd.f32 0.0, %v939
  %v941 = vpop.f32.mrb[0].mxu0
  %942 = vmatprep.mubr.f32.mxu0 0.0
  %943 = vmatmul.mubr.f32.gmra.mrb[0].mxu0 %v805
  %v944 = vpop.f32.mrb[0].mxu0
  %v945 = vadd.f32 0.0, %v944
  %v946 = vpop.f32.mrb[0].mxu0
  %947 = vmatprep.mubr.f32.mxu0 0.0
  %948 = vmatmul.mubr.f32.gmra.mrb[0].mxu0 %v806
  %v949 = vpop.f32.mrb[0].mxu0
  %v950 = vadd.f32 0.0, %v949
  %v951 = vpop.f32.mrb[0].mxu0
  %952 = vmatprep.mubr.f32.mxu0 0.0
  %953 = vmatmul.mubr.f32.gmra.mrb[0].mxu0 %v807
  %v954 = vpop.f32.mrb[0].mxu0
  %v955 = vadd.f32 0.0, %v954
  %v956 = vpop.f32.mrb[0].mxu0
  %957 = vmatprep.mubr.f32.mxu0 0.0
  %958 = vmatmul.mubr.f32.gmra.mrb[0].mxu0 %v808
  %v959 = vpop.f32.mrb[0].mxu0
  %v960 = vadd.f32 0.0, %v959
  %v961 = vpop.f32.mrb[0].mxu0
  %962 = vmatprep.mubr.f32.mxu0 0.0
  %963 = vmatmul.mubr.f32.gmra.mrb[0].mxu0 %v809
  %v964 = vpop.f32.mrb[0].mxu0
  %v965 = vadd.f32 0.0, %v964
  %v966 = vpop.f32.mrb[0].mxu0
  %967 = vmatprep.mubr.f32.mxu0 0.0
  %968 = vmatmul.mubr.f32.gmra.mrb[0].mxu0 %v810
  %v969 = vpop.f32.mrb[0].mxu0
  %v970 = vadd.f32 0.0, %v969
  %v971 = vpop.f32.mrb[0].mxu0
  %972 = vdwg.mxu0
  %973 = vmatprep.subr.mxu0 0.0
  %974 = vmatpush1.msra.mxu0 %v779
  %975 = vmatprep.subr.mxu0 0.0
  %976 = vmatpush1.msra.mxu0 %v780
  %977 = vmatprep.subr.mxu0 0.0
  %978 = vmatpush1.msra.mxu0 %v781
  %979 = vmatprep.subr.mxu0 0.0
  %980 = vmatpush1.msra.mxu0 %v782
  %981 = vmatprep.subr.mxu0 0.0
  %982 = vmatpush1.msra.mxu0 %v783
  %983 = vmatprep.subr.mxu0 0.0
  %984 = vmatpush1.msra.mxu0 %v784
  %985 = vmatprep.subr.mxu0 0.0
  %986 = vmatpush1.msra.mxu0 %v785
  %987 = vmatprep.subr.mxu0 0.0
  %988 = vmatpush1.msra.mxu0 %v786
  %989 = vmatprep.subr.mxu0 0.0
  %990 = vmatpush1.msra.mxu0 %v787
  %991 = vmatprep.subr.mxu0 0.0
  %992 = vmatpush1.msra.mxu0 %v788
  %993 = vmatprep.subr.mxu0 0.0
  %994 = vmatpush1.msra.mxu0 %v789
  %995 = vmatprep.subr.mxu0 0.0
  %996 = vmatpush1.msra.mxu0 %v790
  %997 = vmatprep.subr.mxu0 0.0
  %998 = vmatpush1.msra.mxu0 %v791
  %999 = vmatprep.subr.mxu0 0.0
  %1000 = vmatpush1.msra.mxu0 %v792
  %1001 = vmatprep.subr.mxu0 0.0
  %1002 = vmatpush1.msra.mxu0 %v793
  %1003 = vmatprep.subr.mxu0 0.0
  %1004 = vmatpush1.msra.mxu0 %v794
  %1005 = vmatprep.subr.mxu0 0.0
  %1006 = vmatpush1.msra.mxu0 0.0
  %1007 = vmatprep.subr.mxu0 0.0
  %1008 = vmatpush1.msra.mxu0 0.0
  %1009 = vmatprep.subr.mxu0 0.0
  %1010 = vmatpush1.msra.mxu0 0.0
  %1011 = vmatprep.subr.mxu0 0.0
  %1012 = vmatpush1.msra.mxu0 0.0
  %1013 = vmatprep.subr.mxu0 0.0
  %1014 = vmatpush1.msra.mxu0 0.0
  %1015 = vmatprep.subr.mxu0 0.0
  %1016 = vmatpush1.msra.mxu0 0.0
  %1017 = vmatprep.subr.mxu0 0.0
  %1018 = vmatpush1.msra.mxu0 0.0
  %1019 = vmatprep.subr.mxu0 0.0
  %1020 = vmatpush1.msra.mxu0 0.0
  %1021 = vmatprep.subr.mxu0 0.0
  %1022 = vmatpush1.msra.mxu0 0.0
  %1023 = vmatprep.subr.mxu0 0.0
  %1024 = vmatpush1.msra.mxu0 0.0
  %1025 = vmatprep.subr.mxu0 0.0
  %1026 = vmatpush1.msra.mxu0 0.0
  %1027 = vmatprep.subr.mxu0 0.0
  %1028 = vmatpush1.msra.mxu0 0.0
  %1029 = vmatprep.subr.mxu0 0.0
  %1030 = vmatpush1.msra.mxu0 0.0
  %1031 = vmatprep.subr.mxu0 0.0
  %1032 = vmatpush1.msra.mxu0 0.0
  %1033 = vmatprep.subr.mxu0 0.0
  %1034 = vmatpush1.msra.mxu0 0.0
  %1035 = vmatprep.subr.mxu0 0.0
  %1036 = vmatpush1.msra.mxu0 0.0
  %1037 = vmatprep.mubr.f32.mxu0 0.0
  %1038 = vmatmul.mubr.f32.gmra.mrb[0].mxu0 %v763
  %v1039 = vpop.f32.mrb[0].mxu0
  %v1040 = vadd.f32 %v895, %v1039
  %v1041 = vpop.f32.mrb[0].mxu0
  %1042 = vmatprep.mubr.f32.mxu0 0.0
  %1043 = vmatmul.mubr.f32.gmra.mrb[0].mxu0 %v764
  %v1044 = vpop.f32.mrb[0].mxu0
  %v1045 = vadd.f32 %v900, %v1044
  %v1046 = vpop.f32.mrb[0].mxu0
  %1047 = vmatprep.mubr.f32.mxu0 0.0
  %1048 = vmatmul.mubr.f32.gmra.mrb[0].mxu0 %v765
  %v1049 = vpop.f32.mrb[0].mxu0
  %v1050 = vadd.f32 %v905, %v1049
  %v1051 = vpop.f32.mrb[0].mxu0
  %1052 = vmatprep.mubr.f32.mxu0 0.0
  %1053 = vmatmul.mubr.f32.gmra.mrb[0].mxu0 %v766
  %v1054 = vpop.f32.mrb[0].mxu0
  %v1055 = vadd.f32 %v910, %v1054
  %v1056 = vpop.f32.mrb[0].mxu0
  %1057 = vmatprep.mubr.f32.mxu0 0.0
  %1058 = vmatmul.mubr.f32.gmra.mrb[0].mxu0 %v767
  %v1059 = vpop.f32.mrb[0].mxu0
  %v1060 = vadd.f32 %v915, %v1059
  %v1061 = vpop.f32.mrb[0].mxu0
  %1062 = vmatprep.mubr.f32.mxu0 0.0
  %1063 = vmatmul.mubr.f32.gmra.mrb[0].mxu0 %v768
  %v1064 = vpop.f32.mrb[0].mxu0
  %v1065 = vadd.f32 %v920, %v1064
  %v1066 = vpop.f32.mrb[0].mxu0
  %1067 = vmatprep.mubr.f32.mxu0 0.0
  %1068 = vmatmul.mubr.f32.gmra.mrb[0].mxu0 %v769
  %v1069 = vpop.f32.mrb[0].mxu0
  %v1070 = vadd.f32 %v925, %v1069
  %v1071 = vpop.f32.mrb[0].mxu0
  %1072 = vmatprep.mubr.f32.mxu0 0.0
  %1073 = vmatmul.mubr.f32.gmra.mrb[0].mxu0 %v770
  %v1074 = vpop.f32.mrb[0].mxu0
  %v1075 = vadd.f32 %v930, %v1074
  %v1076 = vpop.f32.mrb[0].mxu0
  %1077 = vmatprep.mubr.f32.mxu0 0.0
  %1078 = vmatmul.mubr.f32.gmra.mrb[0].mxu0 %v771
  %v1079 = vpop.f32.mrb[0].mxu0
  %v1080 = vadd.f32 %v935, %v1079
  %v1081 = vpop.f32.mrb[0].mxu0
  %1082 = vmatprep.mubr.f32.mxu0 0.0
  %1083 = vmatmul.mubr.f32.gmra.mrb[0].mxu0 %v772
  %v1084 = vpop.f32.mrb[0].mxu0
  %v1085 = vadd.f32 %v940, %v1084
  %v1086 = vpop.f32.mrb[0].mxu0
  %1087 = vmatprep.mubr.f32.mxu0 0.0
  %1088 = vmatmul.mubr.f32.gmra.mrb[0].mxu0 %v773
  %v1089 = vpop.f32.mrb[0].mxu0
  %v1090 = vadd.f32 %v945, %v1089
  %v1091 = vpop.f32.mrb[0].mxu0
  %1092 = vmatprep.mubr.f32.mxu0 0.0
  %1093 = vmatmul.mubr.f32.gmra.mrb[0].mxu0 %v774
  %v1094 = vpop.f32.mrb[0].mxu0
  %v1095 = vadd.f32 %v950, %v1094
  %v1096 = vpop.f32.mrb[0].mxu0
  %1097 = vmatprep.mubr.f32.mxu0 0.0
  %1098 = vmatmul.mubr.f32.gmra.mrb[0].mxu0 %v775
  %v1099 = vpop.f32.mrb[0].mxu0
  %v1100 = vadd.f32 %v955, %v1099
  %v1101 = vpop.f32.mrb[0].mxu0
  %1102 = vmatprep.mubr.f32.mxu0 0.0
  %1103 = vmatmul.mubr.f32.gmra.mrb[0].mxu0 %v776
  %v1104 = vpop.f32.mrb[0].mxu0
  %v1105 = vadd.f32 %v960, %v1104
  %v1106 = vpop.f32.mrb[0].mxu0
  %1107 = vmatprep.mubr.f32.mxu0 0.0
  %1108 = vmatmul.mubr.f32.gmra.mrb[0].mxu0 %v777
  %v1109 = vpop.f32.mrb[0].mxu0
  %v1110 = vadd.f32 %v965, %v1109
  %v1111 = vpop.f32.mrb[0].mxu0
  %1112 = vmatprep.mubr.f32.mxu0 0.0
  %1113 = vmatmul.mubr.f32.gmra.mrb[0].mxu0 %v778
  %v1114 = vpop.f32.mrb[0].mxu0
  %v1115 = vadd.f32 %v970, %v1114
  %v1116 = vpop.f32.mrb[0].mxu0
  %1117 = vdwg.mxu0
  %s1118 = scalar_lea.vmem [#allocation2], 16
  %v1119 = vld [vmem:[%s1118] sm:$0xff]
  %v1120 = vld [vmem:[%s1118 + $0x8] sm:$0xff]
  %v1121 = vld [vmem:[%s1118 + $0x10] sm:$0xff]
  %v1122 = vld [vmem:[%s1118 + $0x18] sm:$0xff]
  %v1123 = vld [vmem:[%s1118 + $0x20] sm:$0xff]
  %v1124 = vld [vmem:[%s1118 + $0x28] sm:$0xff]
  %v1125 = vld [vmem:[%s1118 + $0x30] sm:$0xff]
  %v1126 = vld [vmem:[%s1118 + $0x38] sm:$0xff]
  %v1127 = vld [vmem:[%s1118 + $0x40] sm:$0xff]
  %v1128 = vld [vmem:[%s1118 + $0x48] sm:$0xff]
  %v1129 = vld [vmem:[%s1118 + $0x50] sm:$0xff]
  %v1130 = vld [vmem:[%s1118 + $0x58] sm:$0xff]
  %v1131 = vld [vmem:[%s1118 + $0x60] sm:$0xff]
  %v1132 = vld [vmem:[%s1118 + $0x68] sm:$0xff]
  %v1133 = vld [vmem:[%s1118 + $0x70] sm:$0xff]
  %v1134 = vld [vmem:[%s1118 + $0x78] sm:$0xff]
  %s1135 = scalar_lea.vmem %s3, 256
  %v1136 = vld [vmem:[%s1135] sm:$0xff]
  %v1137 = vld [vmem:[%s1135 + $0x8] sm:$0xff]
  %v1138 = vld [vmem:[%s1135 + $0x10] sm:$0xff]
  %v1139 = vld [vmem:[%s1135 + $0x18] sm:$0xff]
  %v1140 = vld [vmem:[%s1135 + $0x20] sm:$0xff]
  %v1141 = vld [vmem:[%s1135 + $0x28] sm:$0xff]
  %v1142 = vld [vmem:[%s1135 + $0x30] sm:$0xff]
  %v1143 = vld [vmem:[%s1135 + $0x38] sm:$0xff]
  %v1144 = vld [vmem:[%s1135 + $0x40] sm:$0xff]
  %v1145 = vld [vmem:[%s1135 + $0x48] sm:$0xff]
  %v1146 = vld [vmem:[%s1135 + $0x50] sm:$0xff]
  %v1147 = vld [vmem:[%s1135 + $0x58] sm:$0xff]
  %v1148 = vld [vmem:[%s1135 + $0x60] sm:$0xff]
  %v1149 = vld [vmem:[%s1135 + $0x68] sm:$0xff]
  %v1150 = vld [vmem:[%s1135 + $0x70] sm:$0xff]
  %v1151 = vld [vmem:[%s1135 + $0x78] sm:$0xff]
  %1152 = vmatprep.subr.mxu0 0.0
  %1153 = vmatpush1.msra.mxu0 %v1136
  %1154 = vmatprep.subr.mxu0 0.0
  %1155 = vmatpush1.msra.mxu0 %v1137
  %1156 = vmatprep.subr.mxu0 0.0
  %1157 = vmatpush1.msra.mxu0 %v1138
  %1158 = vmatprep.subr.mxu0 0.0
  %1159 = vmatpush1.msra.mxu0 %v1139
  %1160 = vmatprep.subr.mxu0 0.0
  %1161 = vmatpush1.msra.mxu0 %v1140
  %1162 = vmatprep.subr.mxu0 0.0
  %1163 = vmatpush1.msra.mxu0 %v1141
  %1164 = vmatprep.subr.mxu0 0.0
  %1165 = vmatpush1.msra.mxu0 %v1142
  %1166 = vmatprep.subr.mxu0 0.0
  %1167 = vmatpush1.msra.mxu0 %v1143
  %1168 = vmatprep.subr.mxu0 0.0
  %1169 = vmatpush1.msra.mxu0 %v1144
  %1170 = vmatprep.subr.mxu0 0.0
  %1171 = vmatpush1.msra.mxu0 %v1145
  %1172 = vmatprep.subr.mxu0 0.0
  %1173 = vmatpush1.msra.mxu0 %v1146
  %1174 = vmatprep.subr.mxu0 0.0
  %1175 = vmatpush1.msra.mxu0 %v1147
  %1176 = vmatprep.subr.mxu0 0.0
  %1177 = vmatpush1.msra.mxu0 %v1148
  %1178 = vmatprep.subr.mxu0 0.0
  %1179 = vmatpush1.msra.mxu0 %v1149
  %1180 = vmatprep.subr.mxu0 0.0
  %1181 = vmatpush1.msra.mxu0 %v1150
  %1182 = vmatprep.subr.mxu0 0.0
  %1183 = vmatpush1.msra.mxu0 %v1151
  %1184 = vmatprep.subr.mxu0 0.0
  %1185 = vmatpush1.msra.mxu0 0.0
  %1186 = vmatprep.subr.mxu0 0.0
  %1187 = vmatpush1.msra.mxu0 0.0
  %1188 = vmatprep.subr.mxu0 0.0
  %1189 = vmatpush1.msra.mxu0 0.0
  %1190 = vmatprep.subr.mxu0 0.0
  %1191 = vmatpush1.msra.mxu0 0.0
  %1192 = vmatprep.subr.mxu0 0.0
  %1193 = vmatpush1.msra.mxu0 0.0
  %1194 = vmatprep.subr.mxu0 0.0
  %1195 = vmatpush1.msra.mxu0 0.0
  %1196 = vmatprep.subr.mxu0 0.0
  %1197 = vmatpush1.msra.mxu0 0.0
  %1198 = vmatprep.subr.mxu0 0.0
  %1199 = vmatpush1.msra.mxu0 0.0
  %1200 = vmatprep.subr.mxu0 0.0
  %1201 = vmatpush1.msra.mxu0 0.0
  %1202 = vmatprep.subr.mxu0 0.0
  %1203 = vmatpush1.msra.mxu0 0.0
  %1204 = vmatprep.subr.mxu0 0.0
  %1205 = vmatpush1.msra.mxu0 0.0
  %1206 = vmatprep.subr.mxu0 0.0
  %1207 = vmatpush1.msra.mxu0 0.0
  %1208 = vmatprep.subr.mxu0 0.0
  %1209 = vmatpush1.msra.mxu0 0.0
  %1210 = vmatprep.subr.mxu0 0.0
  %1211 = vmatpush1.msra.mxu0 0.0
  %1212 = vmatprep.subr.mxu0 0.0
  %1213 = vmatpush1.msra.mxu0 0.0
  %1214 = vmatprep.subr.mxu0 0.0
  %1215 = vmatpush1.msra.mxu0 0.0
  %1216 = vmatprep.mubr.f32.mxu0 0.0
  %1217 = vmatmul.mubr.f32.gmra.mrb[0].mxu0 %v1119
  %v1218 = vpop.f32.mrb[0].mxu0
  %v1219 = vadd.f32 0.0, %v1218
  %v1220 = vpop.f32.mrb[0].mxu0
  %1221 = vmatprep.mubr.f32.mxu0 0.0
  %1222 = vmatmul.mubr.f32.gmra.mrb[0].mxu0 %v1120
  %v1223 = vpop.f32.mrb[0].mxu0
  %v1224 = vadd.f32 0.0, %v1223
  %v1225 = vpop.f32.mrb[0].mxu0
  %1226 = vmatprep.mubr.f32.mxu0 0.0
  %1227 = vmatmul.mubr.f32.gmra.mrb[0].mxu0 %v1121
  %v1228 = vpop.f32.mrb[0].mxu0
  %v1229 = vadd.f32 0.0, %v1228
  %v1230 = vpop.f32.mrb[0].mxu0
  %1231 = vmatprep.mubr.f32.mxu0 0.0
  %1232 = vmatmul.mubr.f32.gmra.mrb[0].mxu0 %v1122
  %v1233 = vpop.f32.mrb[0].mxu0
  %v1234 = vadd.f32 0.0, %v1233
  %v1235 = vpop.f32.mrb[0].mxu0
  %1236 = vmatprep.mubr.f32.mxu0 0.0
  %1237 = vmatmul.mubr.f32.gmra.mrb[0].mxu0 %v1123
  %v1238 = vpop.f32.mrb[0].mxu0
  %v1239 = vadd.f32 0.0, %v1238
  %v1240 = vpop.f32.mrb[0].mxu0
  %1241 = vmatprep.mubr.f32.mxu0 0.0
  %1242 = vmatmul.mubr.f32.gmra.mrb[0].mxu0 %v1124
  %v1243 = vpop.f32.mrb[0].mxu0
  %v1244 = vadd.f32 0.0, %v1243
  %v1245 = vpop.f32.mrb[0].mxu0
  %1246 = vmatprep.mubr.f32.mxu0 0.0
  %1247 = vmatmul.mubr.f32.gmra.mrb[0].mxu0 %v1125
  %v1248 = vpop.f32.mrb[0].mxu0
  %v1249 = vadd.f32 0.0, %v1248
  %v1250 = vpop.f32.mrb[0].mxu0
  %1251 = vmatprep.mubr.f32.mxu0 0.0
  %1252 = vmatmul.mubr.f32.gmra.mrb[0].mxu0 %v1126
  %v1253 = vpop.f32.mrb[0].mxu0
  %v1254 = vadd.f32 0.0, %v1253
  %v1255 = vpop.f32.mrb[0].mxu0
  %1256 = vmatprep.mubr.f32.mxu0 0.0
  %1257 = vmatmul.mubr.f32.gmra.mrb[0].mxu0 %v1127
  %v1258 = vpop.f32.mrb[0].mxu0
  %v1259 = vadd.f32 0.0, %v1258
  %v1260 = vpop.f32.mrb[0].mxu0
  %1261 = vmatprep.mubr.f32.mxu0 0.0
  %1262 = vmatmul.mubr.f32.gmra.mrb[0].mxu0 %v1128
  %v1263 = vpop.f32.mrb[0].mxu0
  %v1264 = vadd.f32 0.0, %v1263
  %v1265 = vpop.f32.mrb[0].mxu0
  %1266 = vmatprep.mubr.f32.mxu0 0.0
  %1267 = vmatmul.mubr.f32.gmra.mrb[0].mxu0 %v1129
  %v1268 = vpop.f32.mrb[0].mxu0
  %v1269 = vadd.f32 0.0, %v1268
  %v1270 = vpop.f32.mrb[0].mxu0
  %1271 = vmatprep.mubr.f32.mxu0 0.0
  %1272 = vmatmul.mubr.f32.gmra.mrb[0].mxu0 %v1130
  %v1273 = vpop.f32.mrb[0].mxu0
  %v1274 = vadd.f32 0.0, %v1273
  %v1275 = vpop.f32.mrb[0].mxu0
  %1276 = vmatprep.mubr.f32.mxu0 0.0
  %1277 = vmatmul.mubr.f32.gmra.mrb[0].mxu0 %v1131
  %v1278 = vpop.f32.mrb[0].mxu0
  %v1279 = vadd.f32 0.0, %v1278
  %v1280 = vpop.f32.mrb[0].mxu0
  %1281 = vmatprep.mubr.f32.mxu0 0.0
  %1282 = vmatmul.mubr.f32.gmra.mrb[0].mxu0 %v1132
  %v1283 = vpop.f32.mrb[0].mxu0
  %v1284 = vadd.f32 0.0, %v1283
  %v1285 = vpop.f32.mrb[0].mxu0
  %1286 = vmatprep.mubr.f32.mxu0 0.0
  %1287 = vmatmul.mubr.f32.gmra.mrb[0].mxu0 %v1133
  %v1288 = vpop.f32.mrb[0].mxu0
  %v1289 = vadd.f32 0.0, %v1288
  %v1290 = vpop.f32.mrb[0].mxu0
  %1291 = vmatprep.mubr.f32.mxu0 0.0
  %1292 = vmatmul.mubr.f32.gmra.mrb[0].mxu0 %v1134
  %v1293 = vpop.f32.mrb[0].mxu0
  %v1294 = vadd.f32 0.0, %v1293
  %v1295 = vpop.f32.mrb[0].mxu0
  %1296 = vdwg.mxu0
  %v1297 = vadd.f32 %v1040, %v1219
  %v1298 = vadd.f32 %v1045, %v1224
  %v1299 = vadd.f32 %v1050, %v1229
  %v1300 = vadd.f32 %v1055, %v1234
  %v1301 = vadd.f32 %v1060, %v1239
  %v1302 = vadd.f32 %v1065, %v1244
  %v1303 = vadd.f32 %v1070, %v1249
  %v1304 = vadd.f32 %v1075, %v1254
  %v1305 = vadd.f32 %v1080, %v1259
  %v1306 = vadd.f32 %v1085, %v1264
  %v1307 = vadd.f32 %v1090, %v1269
  %v1308 = vadd.f32 %v1095, %v1274
  %v1309 = vadd.f32 %v1100, %v1279
  %v1310 = vadd.f32 %v1105, %v1284
  %v1311 = vadd.f32 %v1110, %v1289
  %v1312 = vadd.f32 %v1115, %v1294
  %v1313 = vld [vmem:[%s4] sm:$0x1]
  %v1315 = vlaneseq
  %v1316 = vshrl.u32 %v1315, 7
  %v1317 = vsub.s32 0, %v1316
  %v1318 = vrot.slane %v1313, %v1317
  %v1320 = vadd.f32 %v1297, %v1318
  %v1321 = vadd.f32 %v1298, %v1318
  %v1322 = vadd.f32 %v1299, %v1318
  %v1323 = vadd.f32 %v1300, %v1318
  %v1324 = vadd.f32 %v1301, %v1318
  %v1325 = vadd.f32 %v1302, %v1318
  %v1326 = vadd.f32 %v1303, %v1318
  %v1327 = vadd.f32 %v1304, %v1318
  %v1328 = vadd.f32 %v1305, %v1318
  %v1329 = vadd.f32 %v1306, %v1318
  %v1330 = vadd.f32 %v1307, %v1318
  %v1331 = vadd.f32 %v1308, %v1318
  %v1332 = vadd.f32 %v1309, %v1318
  %v1333 = vadd.f32 %v1310, %v1318
  %v1334 = vadd.f32 %v1311, %v1318
  %v1335 = vadd.f32 %v1312, %v1318
  %v1336 = vmax.f32 %v1320, 0.0
  %v1337 = vmax.f32 %v1321, 0.0
  %v1338 = vmax.f32 %v1322, 0.0
  %v1339 = vmax.f32 %v1323, 0.0
  %v1340 = vmax.f32 %v1324, 0.0
  %v1341 = vmax.f32 %v1325, 0.0
  %v1342 = vmax.f32 %v1326, 0.0
  %v1343 = vmax.f32 %v1327, 0.0
  %v1344 = vmax.f32 %v1328, 0.0
  %v1345 = vmax.f32 %v1329, 0.0
  %v1346 = vmax.f32 %v1330, 0.0
  %v1347 = vmax.f32 %v1331, 0.0
  %v1348 = vmax.f32 %v1332, 0.0
  %v1349 = vmax.f32 %v1333, 0.0
  %v1350 = vmax.f32 %v1334, 0.0
  %v1351 = vmax.f32 %v1335, 0.0
  %v1352 = vmax.f32 %v1336, %v1337
  %1353 = vrot.lane.b32.xlu0 %v1352, 64
  %v1354 = vpop.permute.xlu0 %1353
  %v1355 = vmax.f32 %v1352, %v1354
  %1356 = vst [vmem:[#allocation3] sm:$0xff] %v1355
  %v1357 = vmax.f32 %v1338, %v1339
  %1358 = vrot.lane.b32.xlu0 %v1357, 64
  %v1359 = vpop.permute.xlu0 %1358
  %v1360 = vmax.f32 %v1357, %v1359
  %1361 = vst [vmem:[#allocation3 + $0x8] sm:$0xff] %v1360
  %v1362 = vmax.f32 %v1340, %v1341
  %1363 = vrot.lane.b32.xlu0 %v1362, 64
  %v1364 = vpop.permute.xlu0 %1363
  %v1365 = vmax.f32 %v1362, %v1364
  %1366 = vst [vmem:[#allocation3 + $0x10] sm:$0xff] %v1365
  %v1367 = vmax.f32 %v1342, %v1343
  %1368 = vrot.lane.b32.xlu0 %v1367, 64
  %v1369 = vpop.permute.xlu0 %1368
  %v1370 = vmax.f32 %v1367, %v1369
  %1371 = vst [vmem:[#allocation3 + $0x18] sm:$0xff] %v1370
  %v1372 = vmax.f32 %v1344, %v1345
  %1373 = vrot.lane.b32.xlu0 %v1372, 64
  %v1374 = vpop.permute.xlu0 %1373
  %v1375 = vmax.f32 %v1372, %v1374
  %1376 = vst [vmem:[#allocation3 + $0x20] sm:$0xff] %v1375
  %v1377 = vmax.f32 %v1346, %v1347
  %1378 = vrot.lane.b32.xlu0 %v1377, 64
  %v1379 = vpop.permute.xlu0 %1378
  %v1380 = vmax.f32 %v1377, %v1379
  %1381 = vst [vmem:[#allocation3 + $0x28] sm:$0xff] %v1380
  %v1382 = vmax.f32 %v1348, %v1349
  %1383 = vrot.lane.b32.xlu0 %v1382, 64
  %v1384 = vpop.permute.xlu0 %1383
  %v1385 = vmax.f32 %v1382, %v1384
  %1386 = vst [vmem:[#allocation3 + $0x30] sm:$0xff] %v1385
  %v1387 = vmax.f32 %v1350, %v1351
  %1388 = vrot.lane.b32.xlu0 %v1387, 64
  %v1389 = vpop.permute.xlu0 %1388
  %v1390 = vmax.f32 %v1387, %v1389
  %1391 = vst [vmem:[#allocation3 + $0x38] sm:$0xff] %v1390
  %v1392 = vld [vmem:[#allocation3] sm:$0xff]
  %v1393 = vld [vmem:[#allocation3 + $0x8] sm:$0xff]
  %v1394 = vld [vmem:[#allocation3 + $0x10] sm:$0xff]
  %v1395 = vld [vmem:[#allocation3 + $0x18] sm:$0xff]
  %v1396 = vld [vmem:[#allocation3 + $0x20] sm:$0xff]
  %v1397 = vld [vmem:[#allocation3 + $0x28] sm:$0xff]
  %v1398 = vld [vmem:[#allocation3 + $0x30] sm:$0xff]
  %v1399 = vld [vmem:[#allocation3 + $0x38] sm:$0xff]
  %v1400 = vld [vmem:[%s5] sm:$0xff]
  %v1401 = vld [vmem:[%s5 + $0x8] sm:$0xff]
  %v1402 = vld [vmem:[%s5 + $0x10] sm:$0xff]
  %v1403 = vld [vmem:[%s5 + $0x18] sm:$0xff]
  %v1404 = vld [vmem:[%s5 + $0x20] sm:$0xff]
  %v1405 = vld [vmem:[%s5 + $0x28] sm:$0xff]
  %v1406 = vld [vmem:[%s5 + $0x30] sm:$0xff]
  %v1407 = vld [vmem:[%s5 + $0x38] sm:$0xff]
  %v1408 = vld [vmem:[%s5 + $0x40] sm:$0xff]
  %v1409 = vld [vmem:[%s5 + $0x48] sm:$0xff]
  %v1410 = vld [vmem:[%s5 + $0x50] sm:$0xff]
  %v1411 = vld [vmem:[%s5 + $0x58] sm:$0xff]
  %v1412 = vld [vmem:[%s5 + $0x60] sm:$0xff]
  %v1413 = vld [vmem:[%s5 + $0x68] sm:$0xff]
  %v1414 = vld [vmem:[%s5 + $0x70] sm:$0xff]
  %v1415 = vld [vmem:[%s5 + $0x78] sm:$0xff]
  %v1416 = vld [vmem:[%s5 + $0x80] sm:$0xff]
  %v1417 = vld [vmem:[%s5 + $0x88] sm:$0xff]
  %v1418 = vld [vmem:[%s5 + $0x90] sm:$0xff]
  %v1419 = vld [vmem:[%s5 + $0x98] sm:$0xff]
  %v1420 = vld [vmem:[%s5 + $0xa0] sm:$0xff]
  %v1421 = vld [vmem:[%s5 + $0xa8] sm:$0xff]
  %v1422 = vld [vmem:[%s5 + $0xb0] sm:$0xff]
  %v1423 = vld [vmem:[%s5 + $0xb8] sm:$0xff]
  %v1424 = vld [vmem:[%s5 + $0xc0] sm:$0xff]
  %v1425 = vld [vmem:[%s5 + $0xc8] sm:$0xff]
  %v1426 = vld [vmem:[%s5 + $0xd0] sm:$0xff]
  %v1427 = vld [vmem:[%s5 + $0xd8] sm:$0xff]
  %v1428 = vld [vmem:[%s5 + $0xe0] sm:$0xff]
  %v1429 = vld [vmem:[%s5 + $0xe8] sm:$0xff]
  %v1430 = vld [vmem:[%s5 + $0xf0] sm:$0xff]
  %v1431 = vld [vmem:[%s5 + $0xf8] sm:$0xff]
  %v1432 = vld [vmem:[%s5 + $0x100] sm:$0xff]
  %v1433 = vld [vmem:[%s5 + $0x108] sm:$0xff]
  %v1434 = vld [vmem:[%s5 + $0x110] sm:$0xff]
  %v1435 = vld [vmem:[%s5 + $0x118] sm:$0xff]
  %v1436 = vld [vmem:[%s5 + $0x120] sm:$0xff]
  %v1437 = vld [vmem:[%s5 + $0x128] sm:$0xff]
  %v1438 = vld [vmem:[%s5 + $0x130] sm:$0xff]
  %v1439 = vld [vmem:[%s5 + $0x138] sm:$0xff]
  %v1440 = vld [vmem:[%s5 + $0x140] sm:$0xff]
  %v1441 = vld [vmem:[%s5 + $0x148] sm:$0xff]
  %v1442 = vld [vmem:[%s5 + $0x150] sm:$0xff]
  %v1443 = vld [vmem:[%s5 + $0x158] sm:$0xff]
  %v1444 = vld [vmem:[%s5 + $0x160] sm:$0xff]
  %v1445 = vld [vmem:[%s5 + $0x168] sm:$0xff]
  %v1446 = vld [vmem:[%s5 + $0x170] sm:$0xff]
  %v1447 = vld [vmem:[%s5 + $0x178] sm:$0xff]
  %v1448 = vld [vmem:[%s5 + $0x180] sm:$0xff]
  %v1449 = vld [vmem:[%s5 + $0x188] sm:$0xff]
  %v1450 = vld [vmem:[%s5 + $0x190] sm:$0xff]
  %v1451 = vld [vmem:[%s5 + $0x198] sm:$0xff]
  %v1452 = vld [vmem:[%s5 + $0x1a0] sm:$0xff]
  %v1453 = vld [vmem:[%s5 + $0x1a8] sm:$0xff]
  %v1454 = vld [vmem:[%s5 + $0x1b0] sm:$0xff]
  %v1455 = vld [vmem:[%s5 + $0x1b8] sm:$0xff]
  %v1456 = vld [vmem:[%s5 + $0x1c0] sm:$0xff]
  %v1457 = vld [vmem:[%s5 + $0x1c8] sm:$0xff]
  %v1458 = vld [vmem:[%s5 + $0x1d0] sm:$0xff]
  %v1459 = vld [vmem:[%s5 + $0x1d8] sm:$0xff]
  %v1460 = vld [vmem:[%s5 + $0x1e0] sm:$0xff]
  %v1461 = vld [vmem:[%s5 + $0x1e8] sm:$0xff]
  %v1462 = vld [vmem:[%s5 + $0x1f0] sm:$0xff]
  %v1463 = vld [vmem:[%s5 + $0x1f8] sm:$0xff]
  %v1464 = vld [vmem:[%s5 + $0x200] sm:$0xff]
  %v1465 = vld [vmem:[%s5 + $0x208] sm:$0xff]
  %v1466 = vld [vmem:[%s5 + $0x210] sm:$0xff]
  %v1467 = vld [vmem:[%s5 + $0x218] sm:$0xff]
  %v1468 = vld [vmem:[%s5 + $0x220] sm:$0xff]
  %v1469 = vld [vmem:[%s5 + $0x228] sm:$0xff]
  %v1470 = vld [vmem:[%s5 + $0x230] sm:$0xff]
  %v1471 = vld [vmem:[%s5 + $0x238] sm:$0xff]
  %v1472 = vld [vmem:[%s5 + $0x240] sm:$0xff]
  %v1473 = vld [vmem:[%s5 + $0x248] sm:$0xff]
  %v1474 = vld [vmem:[%s5 + $0x250] sm:$0xff]
  %v1475 = vld [vmem:[%s5 + $0x258] sm:$0xff]
  %v1476 = vld [vmem:[%s5 + $0x260] sm:$0xff]
  %v1477 = vld [vmem:[%s5 + $0x268] sm:$0xff]
  %v1478 = vld [vmem:[%s5 + $0x270] sm:$0xff]
  %v1479 = vld [vmem:[%s5 + $0x278] sm:$0xff]
  %v1480 = vld [vmem:[%s5 + $0x280] sm:$0xff]
  %v1481 = vld [vmem:[%s5 + $0x288] sm:$0xff]
  %v1482 = vld [vmem:[%s5 + $0x290] sm:$0xff]
  %v1483 = vld [vmem:[%s5 + $0x298] sm:$0xff]
  %v1484 = vld [vmem:[%s5 + $0x2a0] sm:$0xff]
  %v1485 = vld [vmem:[%s5 + $0x2a8] sm:$0xff]
  %v1486 = vld [vmem:[%s5 + $0x2b0] sm:$0xff]
  %v1487 = vld [vmem:[%s5 + $0x2b8] sm:$0xff]
  %v1488 = vld [vmem:[%s5 + $0x2c0] sm:$0xff]
  %v1489 = vld [vmem:[%s5 + $0x2c8] sm:$0xff]
  %v1490 = vld [vmem:[%s5 + $0x2d0] sm:$0xff]
  %v1491 = vld [vmem:[%s5 + $0x2d8] sm:$0xff]
  %v1492 = vld [vmem:[%s5 + $0x2e0] sm:$0xff]
  %v1493 = vld [vmem:[%s5 + $0x2e8] sm:$0xff]
  %v1494 = vld [vmem:[%s5 + $0x2f0] sm:$0xff]
  %v1495 = vld [vmem:[%s5 + $0x2f8] sm:$0xff]
  %v1496 = vld [vmem:[%s5 + $0x300] sm:$0xff]
  %v1497 = vld [vmem:[%s5 + $0x308] sm:$0xff]
  %v1498 = vld [vmem:[%s5 + $0x310] sm:$0xff]
  %v1499 = vld [vmem:[%s5 + $0x318] sm:$0xff]
  %v1500 = vld [vmem:[%s5 + $0x320] sm:$0xff]
  %v1501 = vld [vmem:[%s5 + $0x328] sm:$0xff]
  %v1502 = vld [vmem:[%s5 + $0x330] sm:$0xff]
  %v1503 = vld [vmem:[%s5 + $0x338] sm:$0xff]
  %v1504 = vld [vmem:[%s5 + $0x340] sm:$0xff]
  %v1505 = vld [vmem:[%s5 + $0x348] sm:$0xff]
  %v1506 = vld [vmem:[%s5 + $0x350] sm:$0xff]
  %v1507 = vld [vmem:[%s5 + $0x358] sm:$0xff]
  %v1508 = vld [vmem:[%s5 + $0x360] sm:$0xff]
  %v1509 = vld [vmem:[%s5 + $0x368] sm:$0xff]
  %v1510 = vld [vmem:[%s5 + $0x370] sm:$0xff]
  %v1511 = vld [vmem:[%s5 + $0x378] sm:$0xff]
  %v1512 = vld [vmem:[%s5 + $0x380] sm:$0xff]
  %v1513 = vld [vmem:[%s5 + $0x388] sm:$0xff]
  %v1514 = vld [vmem:[%s5 + $0x390] sm:$0xff]
  %v1515 = vld [vmem:[%s5 + $0x398] sm:$0xff]
  %v1516 = vld [vmem:[%s5 + $0x3a0] sm:$0xff]
  %v1517 = vld [vmem:[%s5 + $0x3a8] sm:$0xff]
  %v1518 = vld [vmem:[%s5 + $0x3b0] sm:$0xff]
  %v1519 = vld [vmem:[%s5 + $0x3b8] sm:$0xff]
  %v1520 = vld [vmem:[%s5 + $0x3c0] sm:$0xff]
  %v1521 = vld [vmem:[%s5 + $0x3c8] sm:$0xff]
  %v1522 = vld [vmem:[%s5 + $0x3d0] sm:$0xff]
  %v1523 = vld [vmem:[%s5 + $0x3d8] sm:$0xff]
  %v1524 = vld [vmem:[%s5 + $0x3e0] sm:$0xff]
  %v1525 = vld [vmem:[%s5 + $0x3e8] sm:$0xff]
  %v1526 = vld [vmem:[%s5 + $0x3f0] sm:$0xff]
  %v1527 = vld [vmem:[%s5 + $0x3f8] sm:$0xff]
  %v1528 = vld [vmem:[%s6] sm:$0x1]
  %v1530 = vlaneseq
  %v1531 = vshrl.u32 %v1530, 7
  %v1532 = vsub.s32 0, %v1531
  %v1533 = vrot.slane %v1528, %v1532
  %1535 = vmatprep.subr.mxu0 0.0
  %1536 = vmatpush1.msra.mxu0 %v1400
  %1537 = vmatprep.subr.mxu0 0.0
  %1538 = vmatpush1.msra.mxu0 %v1401
  %1539 = vmatprep.subr.mxu0 0.0
  %1540 = vmatpush1.msra.mxu0 %v1402
  %1541 = vmatprep.subr.mxu0 0.0
  %1542 = vmatpush1.msra.mxu0 %v1403
  %1543 = vmatprep.subr.mxu0 0.0
  %1544 = vmatpush1.msra.mxu0 %v1404
  %1545 = vmatprep.subr.mxu0 0.0
  %1546 = vmatpush1.msra.mxu0 %v1405
  %1547 = vmatprep.subr.mxu0 0.0
  %1548 = vmatpush1.msra.mxu0 %v1406
  %1549 = vmatprep.subr.mxu0 0.0
  %1550 = vmatpush1.msra.mxu0 %v1407
  %1551 = vmatprep.subr.mxu0 0.0
  %1552 = vmatpush1.msra.mxu0 %v1408
  %1553 = vmatprep.subr.mxu0 0.0
  %1554 = vmatpush1.msra.mxu0 %v1409
  %1555 = vmatprep.subr.mxu0 0.0
  %1556 = vmatpush1.msra.mxu0 %v1410
  %1557 = vmatprep.subr.mxu0 0.0
  %1558 = vmatpush1.msra.mxu0 %v1411
  %1559 = vmatprep.subr.mxu0 0.0
  %1560 = vmatpush1.msra.mxu0 %v1412
  %1561 = vmatprep.subr.mxu0 0.0
  %1562 = vmatpush1.msra.mxu0 %v1413
  %1563 = vmatprep.subr.mxu0 0.0
  %1564 = vmatpush1.msra.mxu0 %v1414
  %1565 = vmatprep.subr.mxu0 0.0
  %1566 = vmatpush1.msra.mxu0 %v1415
  %1567 = vmatprep.subr.mxu0 0.0
  %1568 = vmatpush1.msra.mxu0 %v1416
  %1569 = vmatprep.subr.mxu0 0.0
  %1570 = vmatpush1.msra.mxu0 %v1417
  %1571 = vmatprep.subr.mxu0 0.0
  %1572 = vmatpush1.msra.mxu0 %v1418
  %1573 = vmatprep.subr.mxu0 0.0
  %1574 = vmatpush1.msra.mxu0 %v1419
  %1575 = vmatprep.subr.mxu0 0.0
  %1576 = vmatpush1.msra.mxu0 %v1420
  %1577 = vmatprep.subr.mxu0 0.0
  %1578 = vmatpush1.msra.mxu0 %v1421
  %1579 = vmatprep.subr.mxu0 0.0
  %1580 = vmatpush1.msra.mxu0 %v1422
  %1581 = vmatprep.subr.mxu0 0.0
  %1582 = vmatpush1.msra.mxu0 %v1423
  %1583 = vmatprep.subr.mxu0 0.0
  %1584 = vmatpush1.msra.mxu0 %v1424
  %1585 = vmatprep.subr.mxu0 0.0
  %1586 = vmatpush1.msra.mxu0 %v1425
  %1587 = vmatprep.subr.mxu0 0.0
  %1588 = vmatpush1.msra.mxu0 %v1426
  %1589 = vmatprep.subr.mxu0 0.0
  %1590 = vmatpush1.msra.mxu0 %v1427
  %1591 = vmatprep.subr.mxu0 0.0
  %1592 = vmatpush1.msra.mxu0 %v1428
  %1593 = vmatprep.subr.mxu0 0.0
  %1594 = vmatpush1.msra.mxu0 %v1429
  %1595 = vmatprep.subr.mxu0 0.0
  %1596 = vmatpush1.msra.mxu0 %v1430
  %1597 = vmatprep.subr.mxu0 0.0
  %1598 = vmatpush1.msra.mxu0 %v1431
  %1599 = vmatprep.mubr.f32.mxu0 %v1393
  %1600 = vmatmul.mubr.f32.gmra.mrb[0].mxu0 %v1392
  %v1601 = vpop.f32.mrb[0].mxu0
  %v1602 = vadd.f32 %v1533, %v1601
  %v1603 = vpop.f32.mrb[0].mxu0
  %1604 = vdwg.mxu0
  %1605 = vmatprep.subr.mxu0 0.0
  %1606 = vmatpush1.msra.mxu0 %v1432
  %1607 = vmatprep.subr.mxu0 0.0
  %1608 = vmatpush1.msra.mxu0 %v1433
  %1609 = vmatprep.subr.mxu0 0.0
  %1610 = vmatpush1.msra.mxu0 %v1434
  %1611 = vmatprep.subr.mxu0 0.0
  %1612 = vmatpush1.msra.mxu0 %v1435
  %1613 = vmatprep.subr.mxu0 0.0
  %1614 = vmatpush1.msra.mxu0 %v1436
  %1615 = vmatprep.subr.mxu0 0.0
  %1616 = vmatpush1.msra.mxu0 %v1437
  %1617 = vmatprep.subr.mxu0 0.0
  %1618 = vmatpush1.msra.mxu0 %v1438
  %1619 = vmatprep.subr.mxu0 0.0
  %1620 = vmatpush1.msra.mxu0 %v1439
  %1621 = vmatprep.subr.mxu0 0.0
  %1622 = vmatpush1.msra.mxu0 %v1440
  %1623 = vmatprep.subr.mxu0 0.0
  %1624 = vmatpush1.msra.mxu0 %v1441
  %1625 = vmatprep.subr.mxu0 0.0
  %1626 = vmatpush1.msra.mxu0 %v1442
  %1627 = vmatprep.subr.mxu0 0.0
  %1628 = vmatpush1.msra.mxu0 %v1443
  %1629 = vmatprep.subr.mxu0 0.0
  %1630 = vmatpush1.msra.mxu0 %v1444
  %1631 = vmatprep.subr.mxu0 0.0
  %1632 = vmatpush1.msra.mxu0 %v1445
  %1633 = vmatprep.subr.mxu0 0.0
  %1634 = vmatpush1.msra.mxu0 %v1446
  %1635 = vmatprep.subr.mxu0 0.0
  %1636 = vmatpush1.msra.mxu0 %v1447
  %1637 = vmatprep.subr.mxu0 0.0
  %1638 = vmatpush1.msra.mxu0 %v1448
  %1639 = vmatprep.subr.mxu0 0.0
  %1640 = vmatpush1.msra.mxu0 %v1449
  %1641 = vmatprep.subr.mxu0 0.0
  %1642 = vmatpush1.msra.mxu0 %v1450
  %1643 = vmatprep.subr.mxu0 0.0
  %1644 = vmatpush1.msra.mxu0 %v1451
  %1645 = vmatprep.subr.mxu0 0.0
  %1646 = vmatpush1.msra.mxu0 %v1452
  %1647 = vmatprep.subr.mxu0 0.0
  %1648 = vmatpush1.msra.mxu0 %v1453
  %1649 = vmatprep.subr.mxu0 0.0
  %1650 = vmatpush1.msra.mxu0 %v1454
  %1651 = vmatprep.subr.mxu0 0.0
  %1652 = vmatpush1.msra.mxu0 %v1455
  %1653 = vmatprep.subr.mxu0 0.0
  %1654 = vmatpush1.msra.mxu0 %v1456
  %1655 = vmatprep.subr.mxu0 0.0
  %1656 = vmatpush1.msra.mxu0 %v1457
  %1657 = vmatprep.subr.mxu0 0.0
  %1658 = vmatpush1.msra.mxu0 %v1458
  %1659 = vmatprep.subr.mxu0 0.0
  %1660 = vmatpush1.msra.mxu0 %v1459
  %1661 = vmatprep.subr.mxu0 0.0
  %1662 = vmatpush1.msra.mxu0 %v1460
  %1663 = vmatprep.subr.mxu0 0.0
  %1664 = vmatpush1.msra.mxu0 %v1461
  %1665 = vmatprep.subr.mxu0 0.0
  %1666 = vmatpush1.msra.mxu0 %v1462
  %1667 = vmatprep.subr.mxu0 0.0
  %1668 = vmatpush1.msra.mxu0 %v1463
  %1669 = vmatprep.mubr.f32.mxu0 %v1395
  %1670 = vmatmul.mubr.f32.gmra.mrb[0].mxu0 %v1394
  %v1671 = vpop.f32.mrb[0].mxu0
  %v1672 = vadd.f32 %v1602, %v1671
  %v1673 = vpop.f32.mrb[0].mxu0
  %1674 = vdwg.mxu0
  %1675 = vmatprep.subr.mxu0 0.0
  %1676 = vmatpush1.msra.mxu0 %v1464
  %1677 = vmatprep.subr.mxu0 0.0
  %1678 = vmatpush1.msra.mxu0 %v1465
  %1679 = vmatprep.subr.mxu0 0.0
  %1680 = vmatpush1.msra.mxu0 %v1466
  %1681 = vmatprep.subr.mxu0 0.0
  %1682 = vmatpush1.msra.mxu0 %v1467
  %1683 = vmatprep.subr.mxu0 0.0
  %1684 = vmatpush1.msra.mxu0 %v1468
  %1685 = vmatprep.subr.mxu0 0.0
  %1686 = vmatpush1.msra.mxu0 %v1469
  %1687 = vmatprep.subr.mxu0 0.0
  %1688 = vmatpush1.msra.mxu0 %v1470
  %1689 = vmatprep.subr.mxu0 0.0
  %1690 = vmatpush1.msra.mxu0 %v1471
  %1691 = vmatprep.subr.mxu0 0.0
  %1692 = vmatpush1.msra.mxu0 %v1472
  %1693 = vmatprep.subr.mxu0 0.0
  %1694 = vmatpush1.msra.mxu0 %v1473
  %1695 = vmatprep.subr.mxu0 0.0
  %1696 = vmatpush1.msra.mxu0 %v1474
  %1697 = vmatprep.subr.mxu0 0.0
  %1698 = vmatpush1.msra.mxu0 %v1475
  %1699 = vmatprep.subr.mxu0 0.0
  %1700 = vmatpush1.msra.mxu0 %v1476
  %1701 = vmatprep.subr.mxu0 0.0
  %1702 = vmatpush1.msra.mxu0 %v1477
  %1703 = vmatprep.subr.mxu0 0.0
  %1704 = vmatpush1.msra.mxu0 %v1478
  %1705 = vmatprep.subr.mxu0 0.0
  %1706 = vmatpush1.msra.mxu0 %v1479
  %1707 = vmatprep.subr.mxu0 0.0
  %1708 = vmatpush1.msra.mxu0 %v1480
  %1709 = vmatprep.subr.mxu0 0.0
  %1710 = vmatpush1.msra.mxu0 %v1481
  %1711 = vmatprep.subr.mxu0 0.0
  %1712 = vmatpush1.msra.mxu0 %v1482
  %1713 = vmatprep.subr.mxu0 0.0
  %1714 = vmatpush1.msra.mxu0 %v1483
  %1715 = vmatprep.subr.mxu0 0.0
  %1716 = vmatpush1.msra.mxu0 %v1484
  %1717 = vmatprep.subr.mxu0 0.0
  %1718 = vmatpush1.msra.mxu0 %v1485
  %1719 = vmatprep.subr.mxu0 0.0
  %1720 = vmatpush1.msra.mxu0 %v1486
  %1721 = vmatprep.subr.mxu0 0.0
  %1722 = vmatpush1.msra.mxu0 %v1487
  %1723 = vmatprep.subr.mxu0 0.0
  %1724 = vmatpush1.msra.mxu0 %v1488
  %1725 = vmatprep.subr.mxu0 0.0
  %1726 = vmatpush1.msra.mxu0 %v1489
  %1727 = vmatprep.subr.mxu0 0.0
  %1728 = vmatpush1.msra.mxu0 %v1490
  %1729 = vmatprep.subr.mxu0 0.0
  %1730 = vmatpush1.msra.mxu0 %v1491
  %1731 = vmatprep.subr.mxu0 0.0
  %1732 = vmatpush1.msra.mxu0 %v1492
  %1733 = vmatprep.subr.mxu0 0.0
  %1734 = vmatpush1.msra.mxu0 %v1493
  %1735 = vmatprep.subr.mxu0 0.0
  %1736 = vmatpush1.msra.mxu0 %v1494
  %1737 = vmatprep.subr.mxu0 0.0
  %1738 = vmatpush1.msra.mxu0 %v1495
  %1739 = vmatprep.mubr.f32.mxu0 %v1397
  %1740 = vmatmul.mubr.f32.gmra.mrb[0].mxu0 %v1396
  %v1741 = vpop.f32.mrb[0].mxu0
  %v1742 = vadd.f32 %v1672, %v1741
  %v1743 = vpop.f32.mrb[0].mxu0
  %1744 = vdwg.mxu0
  %1745 = vmatprep.subr.mxu0 0.0
  %1746 = vmatpush1.msra.mxu0 %v1496
  %1747 = vmatprep.subr.mxu0 0.0
  %1748 = vmatpush1.msra.mxu0 %v1497
  %1749 = vmatprep.subr.mxu0 0.0
  %1750 = vmatpush1.msra.mxu0 %v1498
  %1751 = vmatprep.subr.mxu0 0.0
  %1752 = vmatpush1.msra.mxu0 %v1499
  %1753 = vmatprep.subr.mxu0 0.0
  %1754 = vmatpush1.msra.mxu0 %v1500
  %1755 = vmatprep.subr.mxu0 0.0
  %1756 = vmatpush1.msra.mxu0 %v1501
  %1757 = vmatprep.subr.mxu0 0.0
  %1758 = vmatpush1.msra.mxu0 %v1502
  %1759 = vmatprep.subr.mxu0 0.0
  %1760 = vmatpush1.msra.mxu0 %v1503
  %1761 = vmatprep.subr.mxu0 0.0
  %1762 = vmatpush1.msra.mxu0 %v1504
  %1763 = vmatprep.subr.mxu0 0.0
  %1764 = vmatpush1.msra.mxu0 %v1505
  %1765 = vmatprep.subr.mxu0 0.0
  %1766 = vmatpush1.msra.mxu0 %v1506
  %1767 = vmatprep.subr.mxu0 0.0
  %1768 = vmatpush1.msra.mxu0 %v1507
  %1769 = vmatprep.subr.mxu0 0.0
  %1770 = vmatpush1.msra.mxu0 %v1508
  %1771 = vmatprep.subr.mxu0 0.0
  %1772 = vmatpush1.msra.mxu0 %v1509
  %1773 = vmatprep.subr.mxu0 0.0
  %1774 = vmatpush1.msra.mxu0 %v1510
  %1775 = vmatprep.subr.mxu0 0.0
  %1776 = vmatpush1.msra.mxu0 %v1511
  %1777 = vmatprep.subr.mxu0 0.0
  %1778 = vmatpush1.msra.mxu0 %v1512
  %1779 = vmatprep.subr.mxu0 0.0
  %1780 = vmatpush1.msra.mxu0 %v1513
  %1781 = vmatprep.subr.mxu0 0.0
  %1782 = vmatpush1.msra.mxu0 %v1514
  %1783 = vmatprep.subr.mxu0 0.0
  %1784 = vmatpush1.msra.mxu0 %v1515
  %1785 = vmatprep.subr.mxu0 0.0
  %1786 = vmatpush1.msra.mxu0 %v1516
  %1787 = vmatprep.subr.mxu0 0.0
  %1788 = vmatpush1.msra.mxu0 %v1517
  %1789 = vmatprep.subr.mxu0 0.0
  %1790 = vmatpush1.msra.mxu0 %v1518
  %1791 = vmatprep.subr.mxu0 0.0
  %1792 = vmatpush1.msra.mxu0 %v1519
  %1793 = vmatprep.subr.mxu0 0.0
  %1794 = vmatpush1.msra.mxu0 %v1520
  %1795 = vmatprep.subr.mxu0 0.0
  %1796 = vmatpush1.msra.mxu0 %v1521
  %1797 = vmatprep.subr.mxu0 0.0
  %1798 = vmatpush1.msra.mxu0 %v1522
  %1799 = vmatprep.subr.mxu0 0.0
  %1800 = vmatpush1.msra.mxu0 %v1523
  %1801 = vmatprep.subr.mxu0 0.0
  %1802 = vmatpush1.msra.mxu0 %v1524
  %1803 = vmatprep.subr.mxu0 0.0
  %1804 = vmatpush1.msra.mxu0 %v1525
  %1805 = vmatprep.subr.mxu0 0.0
  %1806 = vmatpush1.msra.mxu0 %v1526
  %1807 = vmatprep.subr.mxu0 0.0
  %1808 = vmatpush1.msra.mxu0 %v1527
  %1809 = vmatprep.mubr.f32.mxu0 %v1399
  %1810 = vmatmul.mubr.f32.gmra.mrb[0].mxu0 %v1398
  %v1811 = vpop.f32.mrb[0].mxu0
  %v1812 = vadd.f32 %v1742, %v1811
  %v1813 = vpop.f32.mrb[0].mxu0
  %1814 = vdwg.mxu0
  %v1815 = vmax.f32 %v1812, 0.0
  %v1816 = vld [vmem:[%s7] sm:$0xff]
  %v1817 = vld [vmem:[%s7 + $0x8] sm:$0xff]
  %v1818 = vld [vmem:[%s7 + $0x10] sm:$0xff]
  %v1819 = vld [vmem:[%s7 + $0x18] sm:$0xff]
  %v1820 = vld [vmem:[%s8] sm:$0x1]
  %v1822 = vlaneseq
  %v1823 = vshrl.u32 %v1822, 7
  %v1824 = vsub.s32 0, %v1823
  %v1825 = vrot.slane %v1820, %v1824
  %vm1827 = vcmask 261120
  %v1829 = vsel %vm1827, %v1815, 0
  %1831 = vmatprep.subr.mxu0 0.0
  %1832 = vmatpush1.msra.mxu0 %v1816
  %1833 = vmatprep.subr.mxu0 0.0
  %1834 = vmatpush1.msra.mxu0 %v1817
  %1835 = vmatprep.subr.mxu0 0.0
  %1836 = vmatpush1.msra.mxu0 %v1818
  %1837 = vmatprep.subr.mxu0 0.0
  %1838 = vmatpush1.msra.mxu0 %v1819
  %1839 = vmatprep.subr.mxu0 0.0
  %1840 = vmatpush1.msra.mxu0 0.0
  %1841 = vmatprep.subr.mxu0 0.0
  %1842 = vmatpush1.msra.mxu0 0.0
  %1843 = vmatprep.subr.mxu0 0.0
  %1844 = vmatpush1.msra.mxu0 0.0
  %1845 = vmatprep.subr.mxu0 0.0
  %1846 = vmatpush1.msra.mxu0 0.0
  %1847 = vmatprep.subr.mxu0 0.0
  %1848 = vmatpush1.msra.mxu0 0.0
  %1849 = vmatprep.subr.mxu0 0.0
  %1850 = vmatpush1.msra.mxu0 0.0
  %1851 = vmatprep.subr.mxu0 0.0
  %1852 = vmatpush1.msra.mxu0 0.0
  %1853 = vmatprep.subr.mxu0 0.0
  %1854 = vmatpush1.msra.mxu0 0.0
  %1855 = vmatprep.subr.mxu0 0.0
  %1856 = vmatpush1.msra.mxu0 0.0
  %1857 = vmatprep.subr.mxu0 0.0
  %1858 = vmatpush1.msra.mxu0 0.0
  %1859 = vmatprep.subr.mxu0 0.0
  %1860 = vmatpush1.msra.mxu0 0.0
  %1861 = vmatprep.subr.mxu0 0.0
  %1862 = vmatpush1.msra.mxu0 0.0
  %1863 = vmatprep.subr.mxu0 0.0
  %1864 = vmatpush1.msra.mxu0 0.0
  %1865 = vmatprep.subr.mxu0 0.0
  %1866 = vmatpush1.msra.mxu0 0.0
  %1867 = vmatprep.subr.mxu0 0.0
  %1868 = vmatpush1.msra.mxu0 0.0
  %1869 = vmatprep.subr.mxu0 0.0
  %1870 = vmatpush1.msra.mxu0 0.0
  %1871 = vmatprep.subr.mxu0 0.0
  %1872 = vmatpush1.msra.mxu0 0.0
  %1873 = vmatprep.subr.mxu0 0.0
  %1874 = vmatpush1.msra.mxu0 0.0
  %1875 = vmatprep.subr.mxu0 0.0
  %1876 = vmatpush1.msra.mxu0 0.0
  %1877 = vmatprep.subr.mxu0 0.0
  %1878 = vmatpush1.msra.mxu0 0.0
  %1879 = vmatprep.subr.mxu0 0.0
  %1880 = vmatpush1.msra.mxu0 0.0
  %1881 = vmatprep.subr.mxu0 0.0
  %1882 = vmatpush1.msra.mxu0 0.0
  %1883 = vmatprep.subr.mxu0 0.0
  %1884 = vmatpush1.msra.mxu0 0.0
  %1885 = vmatprep.subr.mxu0 0.0
  %1886 = vmatpush1.msra.mxu0 0.0
  %1887 = vmatprep.subr.mxu0 0.0
  %1888 = vmatpush1.msra.mxu0 0.0
  %1889 = vmatprep.subr.mxu0 0.0
  %1890 = vmatpush1.msra.mxu0 0.0
  %1891 = vmatprep.subr.mxu0 0.0
  %1892 = vmatpush1.msra.mxu0 0.0
  %1893 = vmatprep.subr.mxu0 0.0
  %1894 = vmatpush1.msra.mxu0 0.0
  %1895 = vmatprep.mubr.f32.mxu0 0.0
  %1896 = vmatmul.mubr.f32.gmra.mrb[0].mxu0 %v1829
  %v1897 = vpop.f32.mrb[0].mxu0
  %v1898 = vadd.f32 %v1825, %v1897
  %v1899 = vpop.f32.mrb[0].mxu0
  %1900 = vdwg.mxu0
  %1901 = vst [vmem:[%s9] sm:$0xff] %v1898
  // Predicated region
  $region38: #{cnn_forward.1} parent=0 // pred_check
    _
  $region39: #{cnn_forward.1} parent=0 // pred_check_branch
    %1903 = sbr.rel (0) target = $region41
  $region40: #{cnn_forward.1} parent=0 // pred_region
    _
  $region41: #{cnn_forward.1} parent=0 // pred_fallthru
    _
  // Predicated region
  $region42: #{cnn_forward.1} parent=0 // pred_check
    _
  $region43: #{cnn_forward.1} parent=0 // pred_check_branch
    %1905 = sbr.rel (0) target = $region45
  $region44: #{cnn_forward.1} parent=0 // pred_region
    _
  $region45: #{cnn_forward.1} parent=0 // pred_fallthru
    _

</llo_original>
